<compile_context>
chip_gen: v7x
topology: tpu7x:2x2x1
jax: 0.10.0
libtpu: 0.0.40
codegen_flags: <defaults>
</compile_context>

<pallas_src>
import functools

import jax
import jax.numpy as jnp
from jax import lax
from jax.experimental import pallas as pl
from jax.experimental.pallas import tpu as pltpu

LN_EPS = 1e-5
MASK_NEG = -1e30  # finite sentinel: exp(MASK_NEG - row_max) underflows to 0


# ---------------------------------------------------------------------------
# small helpers
# ---------------------------------------------------------------------------
def _supports_single_buffering():
    try:
        pl.BlockSpec((8, 128), lambda i: (0, 0), pipeline_mode=pl.Buffered(1))
        return True
    except Exception:
        return False


_HAS_BUFFERED = _supports_single_buffering()


def _single_buffered(shape, index_map):
    """Constant-index weight blocks: single-buffer them (halves weight VMEM)."""
    if _HAS_BUFFERED:
        return pl.BlockSpec(shape, index_map, pipeline_mode=pl.Buffered(1))
    return pl.BlockSpec(shape, index_map)


def _pick_vmem_limit():
    # ~5/8 of physical VMEM: ~40 MiB on v7x (64 MiB), ~80 MiB on v5e/v6e (128 MiB).
    try:
        cap = pltpu.get_tpu_info().vmem_capacity_bytes
        return int(min(cap * 5 // 8, 96 * 1024 * 1024))
    except Exception:
        return 48 * 1024 * 1024


def _pick_q_tile(T, target):
    """Largest multiple-of-8 divisor of T that is <= target (else full T)."""
    best = None
    cand = 8
    while cand <= min(T, target):
        if T % cand == 0:
            best = cand
        cand += 8
    return best if best is not None else T


def _layernorm(x, w, b, eps=LN_EPS):
    mu = jnp.mean(x, axis=-1, keepdims=True)
    var = jnp.mean((x - mu) ** 2, axis=-1, keepdims=True)
    return (x - mu) * lax.rsqrt(var + eps) * w + b


# Row layout of the packed per-layer vector block `pv` (all rows D wide):
#   0: bout  1: n2w  2: n2b  3: b2  4: final_ln_w  5: final_ln_b  6..6+K-1: fsmn taps
_PV_BOUT, _PV_N2W, _PV_N2B, _PV_B2, _PV_FLNW, _PV_FLNB, _PV_FSMN0 = 0, 1, 2, 3, 4, 5, 6


# ---------------------------------------------------------------------------
# Fused SANM encoder-layer kernel
# ---------------------------------------------------------------------------
def _encoder_layer_kernel(
    lens_ref,                                   # scalar prefetch: (B,) int32
    x_ref, n1_ref, wqkv_ref, bqkv_ref, wout_ref, pv_ref, w1_ref, b1_ref, w2_ref,
    o_ref,
    q_scr, k_scr, v_scr, vpad_scr,
    *, T, TQ, D, H, K, left_pad, in_eq_out, apply_final_ln):
    dk = D // H
    bf16 = jnp.bfloat16

    b = pl.program_id(0)
    qi = pl.program_id(1)
    length = lens_ref[b]

    # ---- once per batch element: norm1 + full-sequence QKV into scratch ----
    @pl.when(qi == 0)
    def _():
        x = x_ref[0].astype(jnp.float32)                           # (T, Din)
        xn = _layernorm(x, n1_ref[0:1, :], n1_ref[1:2, :]).astype(bf16)
        t_col = lax.broadcasted_iota(jnp.int32, (T, 1), 0)
        mcol = (t_col < length).astype(jnp.float32)                # (T, 1)
        # Split the QKV projection: only one (T, D) f32 temporary live at a time.
        q_scr[...] = (jnp.dot(xn, wqkv_ref[:, 0:D],
                              preferred_element_type=jnp.float32)
                      + bqkv_ref[:, 0:D])                          # scale pre-folded
        k_scr[...] = (jnp.dot(xn, wqkv_ref[:, D:2 * D],
                              preferred_element_type=jnp.float32)
                      + bqkv_ref[:, D:2 * D]).astype(bf16)
        v_m = (jnp.dot(xn, wqkv_ref[:, 2 * D:3 * D],
                       preferred_element_type=jnp.float32)
               + bqkv_ref[:, 2 * D:3 * D]) * mcol                  # masked values
        v_scr[...] = v_m.astype(bf16)
        vpad_scr[...] = jnp.zeros_like(vpad_scr)
        vpad_scr[left_pad:left_pad + T, :] = v_m                   # zero-padded copy

    q_start = pl.multiple_of(qi * TQ, TQ)
    t_row = q_start + lax.broadcasted_iota(jnp.int32, (TQ, 1), 0)
    mrow = (t_row < length).astype(jnp.float32)                    # (TQ, 1)
    kmask = lax.broadcasted_iota(jnp.int32, (1, T), 1) < length    # (1, T)

    pv = pv_ref[...]                                               # (6+K, D)

    # ---- FSMN depthwise conv for this tile (static taps, zero-padded edges) ----
    win = vpad_scr[pl.ds(q_start, TQ + K - 1), :]                  # (TQ+K-1, D) f32
    taps = pv[_PV_FSMN0:_PV_FSMN0 + K, :]                          # (K, D)
    fs = jnp.zeros((TQ, D), jnp.float32)
    for kk in range(K):
        fs = fs + win[kk:kk + TQ, :] * taps[kk:kk + 1, :]
    v_m_tile = win[left_pad:left_pad + TQ, :]
    fsmn = (fs + v_m_tile) * mrow

    # ---- multi-head attention for this query tile (key-axis mask) ----
    q_tile = q_scr[pl.ds(q_start, TQ), :].astype(bf16)             # (TQ, D)
    ctx_parts = []
    for h in range(H):
        qh = q_tile[:, h * dk:(h + 1) * dk]
        kh = k_scr[:, h * dk:(h + 1) * dk]                         # (T, dk) bf16
        vh = v_scr[:, h * dk:(h + 1) * dk]                         # (T, dk) bf16
        s = lax.dot_general(qh, kh, (((1,), (1,)), ((), ())),
                            preferred_element_type=jnp.float32)    # (TQ, T)
        s = jnp.where(kmask, s, MASK_NEG)
        p = jnp.exp(s - jnp.max(s, axis=-1, keepdims=True))        # masked keys -> 0
        inv = pl.reciprocal(jnp.sum(p, axis=-1, keepdims=True), approx=False)
        ctx_h = jnp.dot(p.astype(bf16), vh, preferred_element_type=jnp.float32)
        ctx_parts.append(ctx_h * inv)                              # normalize after PV
    ctx = jnp.concatenate(ctx_parts, axis=-1)                      # (TQ, D)

    att = (jnp.dot(ctx.astype(bf16), wout_ref[...],
                   preferred_element_type=jnp.float32)
           + pv[_PV_BOUT:_PV_BOUT + 1, :])
    sa = att + fsmn
    if in_eq_out:
        x_tile = x_ref[0, pl.ds(q_start, TQ), :].astype(jnp.float32)
        x1 = x_tile + sa
    else:
        x1 = sa

    # ---- norm2 + positionwise feed-forward + residual ----
    x2 = _layernorm(x1, pv[_PV_N2W:_PV_N2W + 1, :], pv[_PV_N2B:_PV_N2B + 1, :])
    h1 = jnp.maximum(
        jnp.dot(x2.astype(bf16), w1_ref[...],
                preferred_element_type=jnp.float32) + b1_ref[...], 0.0)
    ff = (jnp.dot(h1.astype(bf16), w2_ref[...],
                  preferred_element_type=jnp.float32)
          + pv[_PV_B2:_PV_B2 + 1, :])
    out = x1 + ff

    # ---- optionally fused after_norm / tp_norm ----
    if apply_final_ln:
        out = _layernorm(out, pv[_PV_FLNW:_PV_FLNW + 1, :],
                         pv[_PV_FLNB:_PV_FLNB + 1, :])

    o_ref[0] = out.astype(o_ref.dtype)


def encoder_layer(x, ilens, lp, *, H, q_tile=256):
    B, T, Din = x.shape
    D = lp['wout'].shape[0]
    K = lp['K']
    left_pad = (K - 1) // 2   # sanm_shfit = 0
    TQ = _pick_q_tile(T, q_tile)
    num_q = T // TQ

    kernel = functools.partial(
        _encoder_layer_kernel, T=T, TQ=TQ, D=D, H=H, K=K, left_pad=left_pad,
        in_eq_out=lp['in_eq_out'], apply_final_ln=lp['apply_final_ln'])

    def const_spec(a):
        return _single_buffered(a.shape, lambda b, qi, lens: (0, 0))

    in_specs = [
        pl.BlockSpec((1, T, Din), lambda b, qi, lens: (b, 0, 0)),   # x (per batch)
        const_spec(lp['n1']),
        const_spec(lp['wqkv']),
        const_spec(lp['bqkv']),
        const_spec(lp['wout']),
        const_spec(lp['pv']),
        const_spec(lp['w1']),
        const_spec(lp['b1']),
        const_spec(lp['w2']),
    ]

    # TODO(synk): for extreme T also stream K/V in key tiles (online softmax) and
    # prefetch the next layer's weights via a cross-pallas_call DMA future.
    return pl.pallas_call(
        kernel,
        out_shape=jax.ShapeDtypeStruct((B, T, D), x.dtype),
        grid_spec=pltpu.PrefetchScalarGridSpec(
            num_scalar_prefetch=1,
            grid=(B, num_q),
            in_specs=in_specs,
            out_specs=pl.BlockSpec((1, TQ, D), lambda b, qi, lens: (b, qi, 0)),
            scratch_shapes=[
                pltpu.VMEM((T, D), jnp.float32),          # Q (scale folded)
                pltpu.VMEM((T, D), jnp.bfloat16),         # K
                pltpu.VMEM((T, D), jnp.bfloat16),         # V (masked)
                pltpu.VMEM((T + K - 1, D), jnp.float32),  # zero-padded V for FSMN
            ]),
        compiler_params=pltpu.CompilerParams(
            # q-tile axis must stay "arbitrary": K/V scratch is produced at qi==0
            # and consumed by later tiles of the same batch element.
            dimension_semantics=("parallel", "arbitrary"),
            vmem_limit_bytes=_pick_vmem_limit(),
        ),
    )(ilens, x, lp['n1'], lp['wqkv'], lp['bqkv'], lp['wout'], lp['pv'],
      lp['w1'], lp['b1'], lp['w2'])


# ---------------------------------------------------------------------------
# Stand-alone LayerNorm kernel (only needed when tp_blocks == 0)
# ---------------------------------------------------------------------------
def _ln_kernel(x_ref, w_ref, b_ref, o_ref):
    x = x_ref[0].astype(jnp.float32)
    o_ref[0] = _layernorm(x, w_ref[...], b_ref[...]).astype(o_ref.dtype)


def layernorm(x, w, b):
    B, T, D = x.shape
    return pl.pallas_call(
        _ln_kernel,
        out_shape=jax.ShapeDtypeStruct((B, T, D), x.dtype),
        grid_spec=pltpu.PrefetchScalarGridSpec(
            num_scalar_prefetch=0,
            grid=(B,),
            in_specs=[pl.BlockSpec((1, T, D), lambda i: (i, 0, 0)),
                      pl.BlockSpec((1, D), lambda i: (0, 0)),
                      pl.BlockSpec((1, D), lambda i: (0, 0))],
            out_specs=pl.BlockSpec((1, T, D), lambda i: (i, 0, 0)),
        ),
        compiler_params=pltpu.CompilerParams(dimension_semantics=("parallel",)),
    )(x, w, b)


# ---------------------------------------------------------------------------
# Parameter preparation (one-time: bf16 cast, scale folding, vector packing)
# ---------------------------------------------------------------------------
def prepare_layer_params(p, *, H, final_ln=None):
    in_size = p['wqkv'].shape[0]
    D = p['wout'].shape[0]
    K = p['wfsmn'].shape[0]
    scale = (D // H) ** (-0.5)
    f32, bf16 = jnp.float32, jnp.bfloat16

    wqkv = p['wqkv'].astype(f32).at[:, :D].multiply(scale)   # fold attn scale into Q
    bqkv = p['bqkv'].astype(f32).at[:, :D].multiply(scale)
    if final_ln is None:
        flnw = jnp.ones((1, D), f32)
        flnb = jnp.zeros((1, D), f32)
    else:
        flnw = final_ln[0].reshape(1, D).astype(f32)
        flnb = final_ln[1].reshape(1, D).astype(f32)
    pv = jnp.concatenate(
        [p['bout'].reshape(1, D), p['n2w'].reshape(1, D), p['n2b'].reshape(1, D),
         p['b2'].reshape(1, D), flnw, flnb, p['wfsmn']], axis=0).astype(f32)
    n1 = jnp.concatenate([p['n1w'].reshape(1, in_size),
                          p['n1b'].reshape(1, in_size)], axis=0).astype(f32)
    return dict(
        n1=n1, wqkv=wqkv.astype(bf16), bqkv=bqkv,
        wout=p['wout'].astype(bf16), pv=pv,
        w1=p['w1'].astype(bf16), b1=p['b1'].astype(f32), w2=p['w2'].astype(bf16),
        in_eq_out=(in_size == D), apply_final_ln=final_ln is not None, K=K)


def prepare_encoder_params(params, *, H):
    main_raw = list(params['encoders0']) + list(params['encoders'])
    after_ln = (params['after_norm_w'], params['after_norm_b'])
    tp_ln = (params['tp_norm_w'], params['tp_norm_b'])
    main = [prepare_layer_params(
                p, H=H, final_ln=after_ln if i == len(main_raw) - 1 else None)
            for i, p in enumerate(main_raw)]
    tp_raw = list(params['tp_encoders'])
    tp = [prepare_layer_params(
              p, H=H, final_ln=tp_ln if i == len(tp_raw) - 1 else None)
          for i, p in enumerate(tp_raw)]
    return dict(main=main, tp=tp,
                tp_norm_w=tp_ln[0].reshape(1, -1),
                tp_norm_b=tp_ln[1].reshape(1, -1))


# ---------------------------------------------------------------------------
# JAX glue: sinusoidal positional encoding, raw parameter init, full forward
# ---------------------------------------------------------------------------
def sinusoidal_pos_encoding(T, depth, dtype=jnp.float32):
    positions = jnp.arange(1, T + 1, dtype=dtype)
    lti = jnp.log(jnp.asarray(10000.0, dtype)) / (depth / 2 - 1)
    inv_timescales = jnp.exp(jnp.arange(depth // 2, dtype=dtype) * -lti)
    scaled_time = positions.reshape(1, -1, 1) * inv_timescales.reshape(1, 1, -1)
    return jnp.concatenate([jnp.sin(scaled_time), jnp.cos(scaled_time)], axis=2)


def init_layer_params(key, in_size, size, dff, K, scale=0.02):
    ks = jax.random.split(key, 5)
    return dict(
        n1w=jnp.ones((1, in_size), jnp.float32),
        n1b=jnp.zeros((1, in_size), jnp.float32),
        wqkv=jax.random.normal(ks[0], (in_size, 3 * size), jnp.float32) * scale,
        bqkv=jnp.zeros((1, 3 * size), jnp.float32),
        # depthwise conv1d weight (torch: (n_feat, 1, K)) stored as (K, n_feat)
        wfsmn=jax.random.normal(ks[1], (K, size), jnp.float32) * scale,
        wout=jax.random.normal(ks[2], (size, size), jnp.float32) * scale,
        bout=jnp.zeros((1, size), jnp.float32),
        n2w=jnp.ones((1, size), jnp.float32),
        n2b=jnp.zeros((1, size), jnp.float32),
        w1=jax.random.normal(ks[3], (size, dff), jnp.float32) * scale,
        b1=jnp.zeros((1, dff), jnp.float32),
        w2=jax.random.normal(ks[4], (dff, size), jnp.float32) * scale,
        b2=jnp.zeros((1, size), jnp.float32),
    )


def sense_voice_encoder_small(xs_pad, ilens, prepped, *, output_size, H, q_tile=256):
    B, T, Din = xs_pad.shape
    ilens32 = ilens.astype(jnp.int32)

    x = xs_pad * (output_size ** 0.5)
    x = x + sinusoidal_pos_encoding(T, Din, x.dtype)

    for lp in prepped['main']:
        x = encoder_layer(x, ilens32, lp, H=H, q_tile=q_tile)

    olens = jnp.minimum(ilens32, T).astype(jnp.int32)

    if prepped['tp']:
        for lp in prepped['tp']:
            x = encoder_layer(x, ilens32, lp, H=H, q_tile=q_tile)
    else:
        x = layernorm(x, prepped['tp_norm_w'], prepped['tp_norm_b'])
    return x, olens


if __name__ == "__main__":
    # Small synthetic config consistent with SenseVoiceEncoderSmall.__init__
    B, T = 2, 32
    input_size, output_size = 48, 32
    attention_heads, kernel_size, linear_units = 4, 11, 64
    num_blocks, tp_blocks = 2, 1
    q_tile = 16   # 2 query tiles per batch element -> exercises the T tiling

    key = jax.random.PRNGKey(0)
    k_x, k_p = jax.random.split(key)
    xs_pad = jax.random.normal(k_x, (B, T, input_size), jnp.float32)
    ilens = jnp.array([T, 21], jnp.int32)

    keys = jax.random.split(k_p, num_blocks + tp_blocks)
    raw_params = dict(
        encoders0=[init_layer_params(keys[0], input_size, output_size,
                                     linear_units, kernel_size)],
        encoders=[init_layer_params(keys[i], output_size, output_size,
                                    linear_units, kernel_size)
                  for i in range(1, num_blocks)],
        tp_encoders=[init_layer_params(keys[num_blocks + i], output_size,
                                       output_size, linear_units, kernel_size)
                     for i in range(tp_blocks)],
        after_norm_w=jnp.ones((1, output_size), jnp.float32),
        after_norm_b=jnp.zeros((1, output_size), jnp.float32),
        tp_norm_w=jnp.ones((1, output_size), jnp.float32),
        tp_norm_b=jnp.zeros((1, output_size), jnp.float32),
    )
    # One-time parameter preparation: bf16 weights, folded attention scale,
    # packed small vectors, fused after_norm / tp_norm.
    prepped = prepare_encoder_params(raw_params, H=attention_heads)

    out, olens = sense_voice_encoder_small(
        xs_pad, ilens, prepped, output_size=output_size,
        H=attention_heads, q_tile=q_tile)
    jax.block_until_ready(out)
    jax.block_until_ready(olens)
    assert out.shape == (B, T, output_size)
    assert olens.shape == (B,)
    # TODO(synk): dropout / stochastic depth are eval-mode identities and are omitted.
    print("KERNEL_OK")
</pallas_src>

<mosaic_0001>
module attributes {stable_mosaic.version = 11 : i64} {
  func.func @_encoder_layer_kernel(%arg0: i32, %arg1: i32, %arg2: memref<2xi32, #tpu.memory_space<smem>>, %arg3: memref<1x32x48xf32, #tpu.memory_space<vmem>>, %arg4: memref<2x48xf32, #tpu.memory_space<vmem>>, %arg5: memref<48x96xbf16, #tpu.memory_space<vmem>>, %arg6: memref<1x96xf32, #tpu.memory_space<vmem>>, %arg7: memref<32x32xbf16, #tpu.memory_space<vmem>>, %arg8: memref<17x32xf32, #tpu.memory_space<vmem>>, %arg9: memref<32x64xbf16, #tpu.memory_space<vmem>>, %arg10: memref<1x64xf32, #tpu.memory_space<vmem>>, %arg11: memref<64x32xbf16, #tpu.memory_space<vmem>>, %arg12: memref<1x16x32xf32, #tpu.memory_space<vmem>>, %arg13: memref<32x32xf32, #tpu.memory_space<vmem>>, %arg14: memref<32x32xbf16, #tpu.memory_space<vmem>>, %arg15: memref<32x32xbf16, #tpu.memory_space<vmem>>, %arg16: memref<42x32xf32, #tpu.memory_space<vmem>>) attributes {dimension_semantics = [#tpu.dimension_semantics<parallel>, #tpu.dimension_semantics<arbitrary>], iteration_bounds = array<i64: 2, 2>, scalar_prefetch = 1 : i64, scratch_operands = 4 : i64, tpu.core_type = #tpu.core_type<tc>, window_params = [{transform_indices = @transform_0, window_bounds = array<i64: 1, 32, 48>}, {pipeline_mode = #tpu.pipeline_mode<synchronous>, transform_indices = @transform_1, window_bounds = array<i64: 2, 48>}, {pipeline_mode = #tpu.pipeline_mode<synchronous>, transform_indices = @transform_2, window_bounds = array<i64: 48, 96>}, {pipeline_mode = #tpu.pipeline_mode<synchronous>, transform_indices = @transform_3, window_bounds = array<i64: 1, 96>}, {pipeline_mode = #tpu.pipeline_mode<synchronous>, transform_indices = @transform_4, window_bounds = array<i64: 32, 32>}, {pipeline_mode = #tpu.pipeline_mode<synchronous>, transform_indices = @transform_5, window_bounds = array<i64: 17, 32>}, {pipeline_mode = #tpu.pipeline_mode<synchronous>, transform_indices = @transform_6, window_bounds = array<i64: 32, 64>}, {pipeline_mode = #tpu.pipeline_mode<synchronous>, transform_indices = @transform_7, window_bounds = array<i64: 1, 64>}, {pipeline_mode = #tpu.pipeline_mode<synchronous>, transform_indices = @transform_8, window_bounds = array<i64: 64, 32>}, {transform_indices = @transform_9, window_bounds = array<i64: 1, 16, 32>}]} {
    %0 = arith.index_cast %arg0 : i32 to index
    %1 = memref.load %arg2[%0] : memref<2xi32, #tpu.memory_space<smem>>
    %c0_i32 = arith.constant 0 : i32
    %2 = arith.cmpi eq, %arg1, %c0_i32 : i32
    %3 = arith.extui %2 : i1 to i32
    %c0_i32_0 = arith.constant 0 : i32
    %4 = arith.cmpi ne, %3, %c0_i32_0 : i32
    scf.if %4 {
      %c0_57 = arith.constant 0 : index
      %c0_58 = arith.constant 0 : index
      %c0_59 = arith.constant 0 : index
      %214 = vector.load %arg3[%c0_57, %c0_58, %c0_59] : memref<1x32x48xf32, #tpu.memory_space<vmem>>, vector<1x32x48xf32>
      %215 = vector.shape_cast %214 : vector<1x32x48xf32> to vector<32x48xf32>
      %c0_60 = arith.constant 0 : index
      %c0_61 = arith.constant 0 : index
      %216 = vector.load %arg4[%c0_60, %c0_61] : memref<2x48xf32, #tpu.memory_space<vmem>>, vector<1x48xf32>
      %c1 = arith.constant 1 : index
      %c0_62 = arith.constant 0 : index
      %217 = vector.load %arg4[%c1, %c0_62] : memref<2x48xf32, #tpu.memory_space<vmem>>, vector<1x48xf32>
      %cst_63 = arith.constant dense<0.000000e+00> : vector<32xf32>
      %218 = vector.multi_reduction <add>, %215, %cst_63 [1] : vector<32x48xf32> to vector<32xf32>
      %219 = vector.shape_cast %218 : vector<32xf32> to vector<32x1xf32>
      %cst_64 = arith.constant 4.800000e+01 : f32
      %220 = vector.broadcast %cst_64 : f32 to vector<32x1xf32>
      %221 = arith.divf %219, %220 : vector<32x1xf32>
      %222 = vector.broadcast %221 : vector<32x1xf32> to vector<32x48xf32>
      %223 = arith.subf %215, %222 : vector<32x48xf32>
      %224 = arith.mulf %223, %223 : vector<32x48xf32>
      %cst_65 = arith.constant dense<0.000000e+00> : vector<32xf32>
      %225 = vector.multi_reduction <add>, %224, %cst_65 [1] : vector<32x48xf32> to vector<32xf32>
      %226 = vector.shape_cast %225 : vector<32xf32> to vector<32x1xf32>
      %cst_66 = arith.constant 4.800000e+01 : f32
      %227 = vector.broadcast %cst_66 : f32 to vector<32x1xf32>
      %228 = arith.divf %226, %227 : vector<32x1xf32>
      %229 = vector.broadcast %221 : vector<32x1xf32> to vector<32x48xf32>
      %230 = arith.subf %215, %229 : vector<32x48xf32>
      %cst_67 = arith.constant 9.99999974E-6 : f32
      %231 = vector.broadcast %cst_67 : f32 to vector<32x1xf32>
      %232 = arith.addf %228, %231 : vector<32x1xf32>
      %233 = math.rsqrt %232 : vector<32x1xf32>
      %234 = vector.broadcast %233 : vector<32x1xf32> to vector<32x48xf32>
      %235 = arith.mulf %230, %234 : vector<32x48xf32>
      %236 = vector.broadcast %216 : vector<1x48xf32> to vector<32x48xf32>
      %237 = arith.mulf %235, %236 : vector<32x48xf32>
      %238 = vector.broadcast %217 : vector<1x48xf32> to vector<32x48xf32>
      %239 = arith.addf %237, %238 : vector<32x48xf32>
      %240 = arith.truncf %239 : vector<32x48xf32> to vector<32x48xbf16>
      %241 = tpu.iota {dimensions = array<i32: 0>} : vector<32x1xi32>
      %242 = vector.broadcast %1 : i32 to vector<32x1xi32>
      %243 = arith.cmpi slt, %241, %242 : vector<32x1xi32>
      %244 = arith.extui %243 : vector<32x1xi1> to vector<32x1xi32>
      %245 = arith.sitofp %244 : vector<32x1xi32> to vector<32x1xf32>
      %c0_68 = arith.constant 0 : index
      %c0_69 = arith.constant 0 : index
      %246 = vector.load %arg5[%c0_68, %c0_69] : memref<48x96xbf16, #tpu.memory_space<vmem>>, vector<48x32xbf16>
      %cst_70 = arith.constant dense<0.000000e+00> : vector<32x32xf32>
      %247 = tpu.matmul %240, %246, %cst_70 {dimension_numbers = #tpu.dot_dimension_numbers<[1], [0], [0], [1], [0, 0, 1, 1], [], []>} : vector<32x48xbf16>, vector<48x32xbf16>, vector<32x32xf32> -> vector<32x32xf32>
      %c0_71 = arith.constant 0 : index
      %c0_72 = arith.constant 0 : index
      %248 = vector.load %arg6[%c0_71, %c0_72] : memref<1x96xf32, #tpu.memory_space<vmem>>, vector<1x32xf32>
      %249 = vector.broadcast %248 : vector<1x32xf32> to vector<32x32xf32>
      %250 = arith.addf %247, %249 : vector<32x32xf32>
      %c0_73 = arith.constant 0 : index
      %c0_74 = arith.constant 0 : index
      %251 = vector.load %arg13[%c0_73, %c0_74] : memref<32x32xf32, #tpu.memory_space<vmem>>, vector<32x32xf32>
      tpu.vector_store %arg13[%c0_73, %c0_74], %250 {strides = array<i32>} : memref<32x32xf32, #tpu.memory_space<vmem>>, vector<32x32xf32>,
      %c0_75 = arith.constant 0 : index
      %c32 = arith.constant 32 : index
      %252 = vector.load %arg5[%c0_75, %c32] : memref<48x96xbf16, #tpu.memory_space<vmem>>, vector<48x32xbf16>
      %cst_76 = arith.constant dense<0.000000e+00> : vector<32x32xf32>
      %253 = tpu.matmul %240, %252, %cst_76 {dimension_numbers = #tpu.dot_dimension_numbers<[1], [0], [0], [1], [0, 0, 1, 1], [], []>} : vector<32x48xbf16>, vector<48x32xbf16>, vector<32x32xf32> -> vector<32x32xf32>
      %c0_77 = arith.constant 0 : index
      %c32_78 = arith.constant 32 : index
      %254 = vector.load %arg6[%c0_77, %c32_78] : memref<1x96xf32, #tpu.memory_space<vmem>>, vector<1x32xf32>
      %255 = vector.broadcast %254 : vector<1x32xf32> to vector<32x32xf32>
      %256 = arith.addf %253, %255 : vector<32x32xf32>
      %257 = arith.truncf %256 : vector<32x32xf32> to vector<32x32xbf16>
      %c0_79 = arith.constant 0 : index
      %c0_80 = arith.constant 0 : index
      %258 = vector.load %arg14[%c0_79, %c0_80] : memref<32x32xbf16, #tpu.memory_space<vmem>>, vector<32x32xbf16>
      tpu.vector_store %arg14[%c0_79, %c0_80], %257 {strides = array<i32>} : memref<32x32xbf16, #tpu.memory_space<vmem>>, vector<32x32xbf16>,
      %c0_81 = arith.constant 0 : index
      %c64 = arith.constant 64 : index
      %259 = vector.load %arg5[%c0_81, %c64] : memref<48x96xbf16, #tpu.memory_space<vmem>>, vector<48x32xbf16>
      %cst_82 = arith.constant dense<0.000000e+00> : vector<32x32xf32>
      %260 = tpu.matmul %240, %259, %cst_82 {dimension_numbers = #tpu.dot_dimension_numbers<[1], [0], [0], [1], [0, 0, 1, 1], [], []>} : vector<32x48xbf16>, vector<48x32xbf16>, vector<32x32xf32> -> vector<32x32xf32>
      %c0_83 = arith.constant 0 : index
      %c64_84 = arith.constant 64 : index
      %261 = vector.load %arg6[%c0_83, %c64_84] : memref<1x96xf32, #tpu.memory_space<vmem>>, vector<1x32xf32>
      %262 = vector.broadcast %261 : vector<1x32xf32> to vector<32x32xf32>
      %263 = arith.addf %260, %262 : vector<32x32xf32>
      %264 = vector.broadcast %245 : vector<32x1xf32> to vector<32x32xf32>
      %265 = arith.mulf %263, %264 : vector<32x32xf32>
      %266 = arith.truncf %265 : vector<32x32xf32> to vector<32x32xbf16>
      %c0_85 = arith.constant 0 : index
      %c0_86 = arith.constant 0 : index
      %267 = vector.load %arg15[%c0_85, %c0_86] : memref<32x32xbf16, #tpu.memory_space<vmem>>, vector<32x32xbf16>
      tpu.vector_store %arg15[%c0_85, %c0_86], %266 {strides = array<i32>} : memref<32x32xbf16, #tpu.memory_space<vmem>>, vector<32x32xbf16>,
      %cst_87 = arith.constant 0.000000e+00 : f32
      %268 = vector.broadcast %cst_87 : f32 to vector<42x32xf32>
      %c0_88 = arith.constant 0 : index
      %c0_89 = arith.constant 0 : index
      %269 = vector.load %arg16[%c0_88, %c0_89] : memref<42x32xf32, #tpu.memory_space<vmem>>, vector<42x32xf32>
      tpu.vector_store %arg16[%c0_88, %c0_89], %268 {strides = array<i32>} : memref<42x32xf32, #tpu.memory_space<vmem>>, vector<42x32xf32>,
      %c5 = arith.constant 5 : index
      %c0_90 = arith.constant 0 : index
      %270 = vector.load %arg16[%c5, %c0_90] : memref<42x32xf32, #tpu.memory_space<vmem>>, vector<32x32xf32>
      tpu.vector_store %arg16[%c5, %c0_90], %265 {strides = array<i32>} : memref<42x32xf32, #tpu.memory_space<vmem>>, vector<32x32xf32>,
    } else {
    }
    %c16_i32 = arith.constant 16 : i32
    %5 = arith.muli %arg1, %c16_i32 : i32
    %6 = tpu.assume_multiple %5, 16 : i32
    %7 = tpu.iota {dimensions = array<i32: 0>} : vector<16x1xi32>
    %8 = vector.broadcast %6 : i32 to vector<16x1xi32>
    %9 = arith.addi %8, %7 : vector<16x1xi32>
    %10 = vector.broadcast %1 : i32 to vector<16x1xi32>
    %11 = arith.cmpi slt, %9, %10 : vector<16x1xi32>
    %12 = arith.extui %11 : vector<16x1xi1> to vector<16x1xi32>
    %13 = arith.sitofp %12 : vector<16x1xi32> to vector<16x1xf32>
    %14 = tpu.iota {dimensions = array<i32: 1>} : vector<1x32xi32>
    %15 = vector.broadcast %1 : i32 to vector<1x32xi32>
    %16 = arith.cmpi slt, %14, %15 : vector<1x32xi32>
    %c0 = arith.constant 0 : index
    %c0_1 = arith.constant 0 : index
    %17 = vector.load %arg8[%c0, %c0_1] : memref<17x32xf32, #tpu.memory_space<vmem>>, vector<17x32xf32>
    %18 = arith.index_cast %6 : i32 to index
    %c0_2 = arith.constant 0 : index
    %19 = vector.load %arg16[%18, %c0_2] : memref<42x32xf32, #tpu.memory_space<vmem>>, vector<26x32xf32>
    %20 = vector.extract_strided_slice %17 {offsets = [6, 0], sizes = [11, 32], strides = [1, 1]} : vector<17x32xf32> to vector<11x32xf32>
    %cst = arith.constant 0.000000e+00 : f32
    %21 = vector.broadcast %cst : f32 to vector<16x32xf32>
    %22 = vector.extract_strided_slice %19 {offsets = [0, 0], sizes = [16, 32], strides = [1, 1]} : vector<26x32xf32> to vector<16x32xf32>
    %23 = vector.extract_strided_slice %20 {offsets = [0, 0], sizes = [1, 32], strides = [1, 1]} : vector<11x32xf32> to vector<1x32xf32>
    %24 = vector.broadcast %23 : vector<1x32xf32> to vector<16x32xf32>
    %25 = arith.mulf %22, %24 : vector<16x32xf32>
    %26 = arith.addf %21, %25 : vector<16x32xf32>
    %27 = vector.extract_strided_slice %19 {offsets = [1, 0], sizes = [16, 32], strides = [1, 1]} : vector<26x32xf32> to vector<16x32xf32>
    %28 = vector.extract_strided_slice %20 {offsets = [1, 0], sizes = [1, 32], strides = [1, 1]} : vector<11x32xf32> to vector<1x32xf32>
    %29 = vector.broadcast %28 : vector<1x32xf32> to vector<16x32xf32>
    %30 = arith.mulf %27, %29 : vector<16x32xf32>
    %31 = arith.addf %26, %30 : vector<16x32xf32>
    %32 = vector.extract_strided_slice %19 {offsets = [2, 0], sizes = [16, 32], strides = [1, 1]} : vector<26x32xf32> to vector<16x32xf32>
    %33 = vector.extract_strided_slice %20 {offsets = [2, 0], sizes = [1, 32], strides = [1, 1]} : vector<11x32xf32> to vector<1x32xf32>
    %34 = vector.broadcast %33 : vector<1x32xf32> to vector<16x32xf32>
    %35 = arith.mulf %32, %34 : vector<16x32xf32>
    %36 = arith.addf %31, %35 : vector<16x32xf32>
    %37 = vector.extract_strided_slice %19 {offsets = [3, 0], sizes = [16, 32], strides = [1, 1]} : vector<26x32xf32> to vector<16x32xf32>
    %38 = vector.extract_strided_slice %20 {offsets = [3, 0], sizes = [1, 32], strides = [1, 1]} : vector<11x32xf32> to vector<1x32xf32>
    %39 = vector.broadcast %38 : vector<1x32xf32> to vector<16x32xf32>
    %40 = arith.mulf %37, %39 : vector<16x32xf32>
    %41 = arith.addf %36, %40 : vector<16x32xf32>
    %42 = vector.extract_strided_slice %19 {offsets = [4, 0], sizes = [16, 32], strides = [1, 1]} : vector<26x32xf32> to vector<16x32xf32>
    %43 = vector.extract_strided_slice %20 {offsets = [4, 0], sizes = [1, 32], strides = [1, 1]} : vector<11x32xf32> to vector<1x32xf32>
    %44 = vector.broadcast %43 : vector<1x32xf32> to vector<16x32xf32>
    %45 = arith.mulf %42, %44 : vector<16x32xf32>
    %46 = arith.addf %41, %45 : vector<16x32xf32>
    %47 = vector.extract_strided_slice %19 {offsets = [5, 0], sizes = [16, 32], strides = [1, 1]} : vector<26x32xf32> to vector<16x32xf32>
    %48 = vector.extract_strided_slice %20 {offsets = [5, 0], sizes = [1, 32], strides = [1, 1]} : vector<11x32xf32> to vector<1x32xf32>
    %49 = vector.broadcast %48 : vector<1x32xf32> to vector<16x32xf32>
    %50 = arith.mulf %47, %49 : vector<16x32xf32>
    %51 = arith.addf %46, %50 : vector<16x32xf32>
    %52 = vector.extract_strided_slice %19 {offsets = [6, 0], sizes = [16, 32], strides = [1, 1]} : vector<26x32xf32> to vector<16x32xf32>
    %53 = vector.extract_strided_slice %20 {offsets = [6, 0], sizes = [1, 32], strides = [1, 1]} : vector<11x32xf32> to vector<1x32xf32>
    %54 = vector.broadcast %53 : vector<1x32xf32> to vector<16x32xf32>
    %55 = arith.mulf %52, %54 : vector<16x32xf32>
    %56 = arith.addf %51, %55 : vector<16x32xf32>
    %57 = vector.extract_strided_slice %19 {offsets = [7, 0], sizes = [16, 32], strides = [1, 1]} : vector<26x32xf32> to vector<16x32xf32>
    %58 = vector.extract_strided_slice %20 {offsets = [7, 0], sizes = [1, 32], strides = [1, 1]} : vector<11x32xf32> to vector<1x32xf32>
    %59 = vector.broadcast %58 : vector<1x32xf32> to vector<16x32xf32>
    %60 = arith.mulf %57, %59 : vector<16x32xf32>
    %61 = arith.addf %56, %60 : vector<16x32xf32>
    %62 = vector.extract_strided_slice %19 {offsets = [8, 0], sizes = [16, 32], strides = [1, 1]} : vector<26x32xf32> to vector<16x32xf32>
    %63 = vector.extract_strided_slice %20 {offsets = [8, 0], sizes = [1, 32], strides = [1, 1]} : vector<11x32xf32> to vector<1x32xf32>
    %64 = vector.broadcast %63 : vector<1x32xf32> to vector<16x32xf32>
    %65 = arith.mulf %62, %64 : vector<16x32xf32>
    %66 = arith.addf %61, %65 : vector<16x32xf32>
    %67 = vector.extract_strided_slice %19 {offsets = [9, 0], sizes = [16, 32], strides = [1, 1]} : vector<26x32xf32> to vector<16x32xf32>
    %68 = vector.extract_strided_slice %20 {offsets = [9, 0], sizes = [1, 32], strides = [1, 1]} : vector<11x32xf32> to vector<1x32xf32>
    %69 = vector.broadcast %68 : vector<1x32xf32> to vector<16x32xf32>
    %70 = arith.mulf %67, %69 : vector<16x32xf32>
    %71 = arith.addf %66, %70 : vector<16x32xf32>
    %72 = vector.extract_strided_slice %19 {offsets = [10, 0], sizes = [16, 32], strides = [1, 1]} : vector<26x32xf32> to vector<16x32xf32>
    %73 = vector.extract_strided_slice %20 {offsets = [10, 0], sizes = [1, 32], strides = [1, 1]} : vector<11x32xf32> to vector<1x32xf32>
    %74 = vector.broadcast %73 : vector<1x32xf32> to vector<16x32xf32>
    %75 = arith.mulf %72, %74 : vector<16x32xf32>
    %76 = arith.addf %71, %75 : vector<16x32xf32>
    %77 = vector.extract_strided_slice %19 {offsets = [5, 0], sizes = [16, 32], strides = [1, 1]} : vector<26x32xf32> to vector<16x32xf32>
    %78 = arith.addf %76, %77 : vector<16x32xf32>
    %79 = vector.broadcast %13 : vector<16x1xf32> to vector<16x32xf32>
    %80 = arith.mulf %78, %79 : vector<16x32xf32>
    %81 = arith.index_cast %6 : i32 to index
    %c0_3 = arith.constant 0 : index
    %82 = vector.load %arg13[%81, %c0_3] : memref<32x32xf32, #tpu.memory_space<vmem>>, vector<16x32xf32>
    %83 = arith.truncf %82 : vector<16x32xf32> to vector<16x32xbf16>
    %84 = vector.extract_strided_slice %83 {offsets = [0, 0], sizes = [16, 8], strides = [1, 1]} : vector<16x32xbf16> to vector<16x8xbf16>
    %c0_4 = arith.constant 0 : index
    %c0_5 = arith.constant 0 : index
    %85 = vector.load %arg14[%c0_4, %c0_5] : memref<32x32xbf16, #tpu.memory_space<vmem>>, vector<32x8xbf16>
    %c0_6 = arith.constant 0 : index
    %c0_7 = arith.constant 0 : index
    %86 = vector.load %arg15[%c0_6, %c0_7] : memref<32x32xbf16, #tpu.memory_space<vmem>>, vector<32x8xbf16>
    %cst_8 = arith.constant dense<0.000000e+00> : vector<16x32xf32>
    %87 = tpu.matmul %84, %85, %cst_8 {dimension_numbers = #tpu.dot_dimension_numbers<[1], [1], [0], [0], [0, 0, 1, 0], [], []>} : vector<16x8xbf16>, vector<32x8xbf16>, vector<16x32xf32> -> vector<16x32xf32>
    %cst_9 = arith.constant -1.000000e+30 : f32
    %88 = vector.shape_cast %16 : vector<1x32xi1> to vector<1x32xi1>
    %89 = vector.broadcast %88 : vector<1x32xi1> to vector<16x32xi1>
    %90 = vector.broadcast %cst_9 : f32 to vector<16x32xf32>
    %91 = arith.select %89, %87, %90 : vector<16x32xi1>, vector<16x32xf32>
    %cst_10 = arith.constant dense<0xFF800000> : vector<16xf32>
    %92 = vector.multi_reduction <maximumf>, %91, %cst_10 [1] : vector<16x32xf32> to vector<16xf32>
    %93 = vector.shape_cast %92 : vector<16xf32> to vector<16x1xf32>
    %94 = vector.broadcast %93 : vector<16x1xf32> to vector<16x32xf32>
    %95 = arith.subf %91, %94 : vector<16x32xf32>
    %96 = math.exp %95 : vector<16x32xf32>
    %cst_11 = arith.constant dense<0.000000e+00> : vector<16xf32>
    %97 = vector.multi_reduction <add>, %96, %cst_11 [1] : vector<16x32xf32> to vector<16xf32>
    %98 = vector.shape_cast %97 : vector<16xf32> to vector<16x1xf32>
    %99 = tpu.reciprocal %98 : vector<16x1xf32> -> vector<16x1xf32>
    %100 = arith.truncf %96 : vector<16x32xf32> to vector<16x32xbf16>
    %cst_12 = arith.constant dense<0.000000e+00> : vector<16x8xf32>
    %101 = tpu.matmul %100, %86, %cst_12 {dimension_numbers = #tpu.dot_dimension_numbers<[1], [0], [0], [1], [0, 0, 1, 1], [], []>} : vector<16x32xbf16>, vector<32x8xbf16>, vector<16x8xf32> -> vector<16x8xf32>
    %102 = vector.broadcast %99 : vector<16x1xf32> to vector<16x8xf32>
    %103 = arith.mulf %101, %102 : vector<16x8xf32>
    %104 = vector.extract_strided_slice %83 {offsets = [0, 8], sizes = [16, 8], strides = [1, 1]} : vector<16x32xbf16> to vector<16x8xbf16>
    %c0_13 = arith.constant 0 : index
    %c8 = arith.constant 8 : index
    %105 = vector.load %arg14[%c0_13, %c8] : memref<32x32xbf16, #tpu.memory_space<vmem>>, vector<32x8xbf16>
    %c0_14 = arith.constant 0 : index
    %c8_15 = arith.constant 8 : index
    %106 = vector.load %arg15[%c0_14, %c8_15] : memref<32x32xbf16, #tpu.memory_space<vmem>>, vector<32x8xbf16>
    %cst_16 = arith.constant dense<0.000000e+00> : vector<16x32xf32>
    %107 = tpu.matmul %104, %105, %cst_16 {dimension_numbers = #tpu.dot_dimension_numbers<[1], [1], [0], [0], [0, 0, 1, 0], [], []>} : vector<16x8xbf16>, vector<32x8xbf16>, vector<16x32xf32> -> vector<16x32xf32>
    %cst_17 = arith.constant -1.000000e+30 : f32
    %108 = vector.shape_cast %16 : vector<1x32xi1> to vector<1x32xi1>
    %109 = vector.broadcast %108 : vector<1x32xi1> to vector<16x32xi1>
    %110 = vector.broadcast %cst_17 : f32 to vector<16x32xf32>
    %111 = arith.select %109, %107, %110 : vector<16x32xi1>, vector<16x32xf32>
    %cst_18 = arith.constant dense<0xFF800000> : vector<16xf32>
    %112 = vector.multi_reduction <maximumf>, %111, %cst_18 [1] : vector<16x32xf32> to vector<16xf32>
    %113 = vector.shape_cast %112 : vector<16xf32> to vector<16x1xf32>
    %114 = vector.broadcast %113 : vector<16x1xf32> to vector<16x32xf32>
    %115 = arith.subf %111, %114 : vector<16x32xf32>
    %116 = math.exp %115 : vector<16x32xf32>
    %cst_19 = arith.constant dense<0.000000e+00> : vector<16xf32>
    %117 = vector.multi_reduction <add>, %116, %cst_19 [1] : vector<16x32xf32> to vector<16xf32>
    %118 = vector.shape_cast %117 : vector<16xf32> to vector<16x1xf32>
    %119 = tpu.reciprocal %118 : vector<16x1xf32> -> vector<16x1xf32>
    %120 = arith.truncf %116 : vector<16x32xf32> to vector<16x32xbf16>
    %cst_20 = arith.constant dense<0.000000e+00> : vector<16x8xf32>
    %121 = tpu.matmul %120, %106, %cst_20 {dimension_numbers = #tpu.dot_dimension_numbers<[1], [0], [0], [1], [0, 0, 1, 1], [], []>} : vector<16x32xbf16>, vector<32x8xbf16>, vector<16x8xf32> -> vector<16x8xf32>
    %122 = vector.broadcast %119 : vector<16x1xf32> to vector<16x8xf32>
    %123 = arith.mulf %121, %122 : vector<16x8xf32>
    %124 = vector.extract_strided_slice %83 {offsets = [0, 16], sizes = [16, 8], strides = [1, 1]} : vector<16x32xbf16> to vector<16x8xbf16>
    %c0_21 = arith.constant 0 : index
    %c16 = arith.constant 16 : index
    %125 = vector.load %arg14[%c0_21, %c16] : memref<32x32xbf16, #tpu.memory_space<vmem>>, vector<32x8xbf16>
    %c0_22 = arith.constant 0 : index
    %c16_23 = arith.constant 16 : index
    %126 = vector.load %arg15[%c0_22, %c16_23] : memref<32x32xbf16, #tpu.memory_space<vmem>>, vector<32x8xbf16>
    %cst_24 = arith.constant dense<0.000000e+00> : vector<16x32xf32>
    %127 = tpu.matmul %124, %125, %cst_24 {dimension_numbers = #tpu.dot_dimension_numbers<[1], [1], [0], [0], [0, 0, 1, 0], [], []>} : vector<16x8xbf16>, vector<32x8xbf16>, vector<16x32xf32> -> vector<16x32xf32>
    %cst_25 = arith.constant -1.000000e+30 : f32
    %128 = vector.shape_cast %16 : vector<1x32xi1> to vector<1x32xi1>
    %129 = vector.broadcast %128 : vector<1x32xi1> to vector<16x32xi1>
    %130 = vector.broadcast %cst_25 : f32 to vector<16x32xf32>
    %131 = arith.select %129, %127, %130 : vector<16x32xi1>, vector<16x32xf32>
    %cst_26 = arith.constant dense<0xFF800000> : vector<16xf32>
    %132 = vector.multi_reduction <maximumf>, %131, %cst_26 [1] : vector<16x32xf32> to vector<16xf32>
    %133 = vector.shape_cast %132 : vector<16xf32> to vector<16x1xf32>
    %134 = vector.broadcast %133 : vector<16x1xf32> to vector<16x32xf32>
    %135 = arith.subf %131, %134 : vector<16x32xf32>
    %136 = math.exp %135 : vector<16x32xf32>
    %cst_27 = arith.constant dense<0.000000e+00> : vector<16xf32>
    %137 = vector.multi_reduction <add>, %136, %cst_27 [1] : vector<16x32xf32> to vector<16xf32>
    %138 = vector.shape_cast %137 : vector<16xf32> to vector<16x1xf32>
    %139 = tpu.reciprocal %138 : vector<16x1xf32> -> vector<16x1xf32>
    %140 = arith.truncf %136 : vector<16x32xf32> to vector<16x32xbf16>
    %cst_28 = arith.constant dense<0.000000e+00> : vector<16x8xf32>
    %141 = tpu.matmul %140, %126, %cst_28 {dimension_numbers = #tpu.dot_dimension_numbers<[1], [0], [0], [1], [0, 0, 1, 1], [], []>} : vector<16x32xbf16>, vector<32x8xbf16>, vector<16x8xf32> -> vector<16x8xf32>
    %142 = vector.broadcast %139 : vector<16x1xf32> to vector<16x8xf32>
    %143 = arith.mulf %141, %142 : vector<16x8xf32>
    %144 = vector.extract_strided_slice %83 {offsets = [0, 24], sizes = [16, 8], strides = [1, 1]} : vector<16x32xbf16> to vector<16x8xbf16>
    %c0_29 = arith.constant 0 : index
    %c24 = arith.constant 24 : index
    %145 = vector.load %arg14[%c0_29, %c24] : memref<32x32xbf16, #tpu.memory_space<vmem>>, vector<32x8xbf16>
    %c0_30 = arith.constant 0 : index
    %c24_31 = arith.constant 24 : index
    %146 = vector.load %arg15[%c0_30, %c24_31] : memref<32x32xbf16, #tpu.memory_space<vmem>>, vector<32x8xbf16>
    %cst_32 = arith.constant dense<0.000000e+00> : vector<16x32xf32>
    %147 = tpu.matmul %144, %145, %cst_32 {dimension_numbers = #tpu.dot_dimension_numbers<[1], [1], [0], [0], [0, 0, 1, 0], [], []>} : vector<16x8xbf16>, vector<32x8xbf16>, vector<16x32xf32> -> vector<16x32xf32>
    %cst_33 = arith.constant -1.000000e+30 : f32
    %148 = vector.shape_cast %16 : vector<1x32xi1> to vector<1x32xi1>
    %149 = vector.broadcast %148 : vector<1x32xi1> to vector<16x32xi1>
    %150 = vector.broadcast %cst_33 : f32 to vector<16x32xf32>
    %151 = arith.select %149, %147, %150 : vector<16x32xi1>, vector<16x32xf32>
    %cst_34 = arith.constant dense<0xFF800000> : vector<16xf32>
    %152 = vector.multi_reduction <maximumf>, %151, %cst_34 [1] : vector<16x32xf32> to vector<16xf32>
    %153 = vector.shape_cast %152 : vector<16xf32> to vector<16x1xf32>
    %154 = vector.broadcast %153 : vector<16x1xf32> to vector<16x32xf32>
    %155 = arith.subf %151, %154 : vector<16x32xf32>
    %156 = math.exp %155 : vector<16x32xf32>
    %cst_35 = arith.constant dense<0.000000e+00> : vector<16xf32>
    %157 = vector.multi_reduction <add>, %156, %cst_35 [1] : vector<16x32xf32> to vector<16xf32>
    %158 = vector.shape_cast %157 : vector<16xf32> to vector<16x1xf32>
    %159 = tpu.reciprocal %158 : vector<16x1xf32> -> vector<16x1xf32>
    %160 = arith.truncf %156 : vector<16x32xf32> to vector<16x32xbf16>
    %cst_36 = arith.constant dense<0.000000e+00> : vector<16x8xf32>
    %161 = tpu.matmul %160, %146, %cst_36 {dimension_numbers = #tpu.dot_dimension_numbers<[1], [0], [0], [1], [0, 0, 1, 1], [], []>} : vector<16x32xbf16>, vector<32x8xbf16>, vector<16x8xf32> -> vector<16x8xf32>
    %162 = vector.broadcast %159 : vector<16x1xf32> to vector<16x8xf32>
    %163 = arith.mulf %161, %162 : vector<16x8xf32>
    %164 = tpu.concatenate %103, %123, %143, %163 in 1 : vector<16x8xf32>, vector<16x8xf32>, vector<16x8xf32>, vector<16x8xf32> -> vector<16x32xf32>
    %165 = arith.truncf %164 : vector<16x32xf32> to vector<16x32xbf16>
    %c0_37 = arith.constant 0 : index
    %c0_38 = arith.constant 0 : index
    %166 = vector.load %arg7[%c0_37, %c0_38] : memref<32x32xbf16, #tpu.memory_space<vmem>>, vector<32x32xbf16>
    %cst_39 = arith.constant dense<0.000000e+00> : vector<16x32xf32>
    %167 = tpu.matmul %165, %166, %cst_39 {dimension_numbers = #tpu.dot_dimension_numbers<[1], [0], [0], [1], [0, 0, 1, 1], [], []>} : vector<16x32xbf16>, vector<32x32xbf16>, vector<16x32xf32> -> vector<16x32xf32>
    %168 = vector.extract_strided_slice %17 {offsets = [0, 0], sizes = [1, 32], strides = [1, 1]} : vector<17x32xf32> to vector<1x32xf32>
    %169 = vector.broadcast %168 : vector<1x32xf32> to vector<16x32xf32>
    %170 = arith.addf %167, %169 : vector<16x32xf32>
    %171 = arith.addf %170, %80 : vector<16x32xf32>
    %172 = vector.extract_strided_slice %17 {offsets = [1, 0], sizes = [1, 32], strides = [1, 1]} : vector<17x32xf32> to vector<1x32xf32>
    %173 = vector.extract_strided_slice %17 {offsets = [2, 0], sizes = [1, 32], strides = [1, 1]} : vector<17x32xf32> to vector<1x32xf32>
    %cst_40 = arith.constant dense<0.000000e+00> : vector<16xf32>
    %174 = vector.multi_reduction <add>, %171, %cst_40 [1] : vector<16x32xf32> to vector<16xf32>
    %175 = vector.shape_cast %174 : vector<16xf32> to vector<16x1xf32>
    %cst_41 = arith.constant 3.200000e+01 : f32
    %176 = vector.broadcast %cst_41 : f32 to vector<16x1xf32>
    %177 = arith.divf %175, %176 : vector<16x1xf32>
    %178 = vector.broadcast %177 : vector<16x1xf32> to vector<16x32xf32>
    %179 = arith.subf %171, %178 : vector<16x32xf32>
    %180 = arith.mulf %179, %179 : vector<16x32xf32>
    %cst_42 = arith.constant dense<0.000000e+00> : vector<16xf32>
    %181 = vector.multi_reduction <add>, %180, %cst_42 [1] : vector<16x32xf32> to vector<16xf32>
    %182 = vector.shape_cast %181 : vector<16xf32> to vector<16x1xf32>
    %cst_43 = arith.constant 3.200000e+01 : f32
    %183 = vector.broadcast %cst_43 : f32 to vector<16x1xf32>
    %184 = arith.divf %182, %183 : vector<16x1xf32>
    %185 = vector.broadcast %177 : vector<16x1xf32> to vector<16x32xf32>
    %186 = arith.subf %171, %185 : vector<16x32xf32>
    %cst_44 = arith.constant 9.99999974E-6 : f32
    %187 = vector.broadcast %cst_44 : f32 to vector<16x1xf32>
    %188 = arith.addf %184, %187 : vector<16x1xf32>
    %189 = math.rsqrt %188 : vector<16x1xf32>
    %190 = vector.broadcast %189 : vector<16x1xf32> to vector<16x32xf32>
    %191 = arith.mulf %186, %190 : vector<16x32xf32>
    %192 = vector.broadcast %172 : vector<1x32xf32> to vector<16x32xf32>
    %193 = arith.mulf %191, %192 : vector<16x32xf32>
    %194 = vector.broadcast %173 : vector<1x32xf32> to vector<16x32xf32>
    %195 = arith.addf %193, %194 : vector<16x32xf32>
    %196 = arith.truncf %195 : vector<16x32xf32> to vector<16x32xbf16>
    %c0_45 = arith.constant 0 : index
    %c0_46 = arith.constant 0 : index
    %197 = vector.load %arg9[%c0_45, %c0_46] : memref<32x64xbf16, #tpu.memory_space<vmem>>, vector<32x64xbf16>
    %cst_47 = arith.constant dense<0.000000e+00> : vector<16x64xf32>
    %198 = tpu.matmul %196, %197, %cst_47 {dimension_numbers = #tpu.dot_dimension_numbers<[1], [0], [0], [1], [0, 0, 1, 1], [], []>} : vector<16x32xbf16>, vector<32x64xbf16>, vector<16x64xf32> -> vector<16x64xf32>
    %c0_48 = arith.constant 0 : index
    %c0_49 = arith.constant 0 : index
    %199 = vector.load %arg10[%c0_48, %c0_49] : memref<1x64xf32, #tpu.memory_space<vmem>>, vector<1x64xf32>
    %200 = vector.broadcast %199 : vector<1x64xf32> to vector<16x64xf32>
    %201 = arith.addf %198, %200 : vector<16x64xf32>
    %cst_50 = arith.constant 0.000000e+00 : f32
    %202 = vector.broadcast %cst_50 : f32 to vector<16x64xf32>
    %203 = arith.maximumf %201, %202 : vector<16x64xf32>
    %204 = arith.truncf %203 : vector<16x64xf32> to vector<16x64xbf16>
    %c0_51 = arith.constant 0 : index
    %c0_52 = arith.constant 0 : index
    %205 = vector.load %arg11[%c0_51, %c0_52] : memref<64x32xbf16, #tpu.memory_space<vmem>>, vector<64x32xbf16>
    %cst_53 = arith.constant dense<0.000000e+00> : vector<16x32xf32>
    %206 = tpu.matmul %204, %205, %cst_53 {dimension_numbers = #tpu.dot_dimension_numbers<[1], [0], [0], [1], [0, 0, 1, 1], [], []>} : vector<16x64xbf16>, vector<64x32xbf16>, vector<16x32xf32> -> vector<16x32xf32>
    %207 = vector.extract_strided_slice %17 {offsets = [3, 0], sizes = [1, 32], strides = [1, 1]} : vector<17x32xf32> to vector<1x32xf32>
    %208 = vector.broadcast %207 : vector<1x32xf32> to vector<16x32xf32>
    %209 = arith.addf %206, %208 : vector<16x32xf32>
    %210 = arith.addf %171, %209 : vector<16x32xf32>
    %c0_54 = arith.constant 0 : index
    %c0_55 = arith.constant 0 : index
    %c0_56 = arith.constant 0 : index
    %211 = vector.load %arg12[%c0_54, %c0_55, %c0_56] : memref<1x16x32xf32, #tpu.memory_space<vmem>>, vector<1x16x32xf32>
    %212 = vector.shape_cast %211 : vector<1x16x32xf32> to vector<16x32xf32>
    %213 = vector.shape_cast %210 : vector<16x32xf32> to vector<1x16x32xf32>
    tpu.vector_store %arg12[%c0_54, %c0_55, %c0_56], %213 {strides = array<i32>} : memref<1x16x32xf32, #tpu.memory_space<vmem>>, vector<1x16x32xf32>,
    return
  }
  func.func @transform_0(%arg0: i32, %arg1: i32, %arg2: memref<2xi32, #tpu.memory_space<smem>>) -> (i32, i32, i32) {
    %c0_i32 = arith.constant 0 : i32
    %c0_i32_0 = arith.constant 0 : i32
    %c0_i32_1 = arith.constant 0 : i32
    return %arg0, %c0_i32, %c0_i32_0 : i32, i32, i32
  }
  func.func @transform_1(%arg0: i32, %arg1: i32, %arg2: memref<2xi32, #tpu.memory_space<smem>>) -> (i32, i32) {
    %c0_i32 = arith.constant 0 : i32
    %c0_i32_0 = arith.constant 0 : i32
    %c0_i32_1 = arith.constant 0 : i32
    return %c0_i32, %c0_i32_0 : i32, i32
  }
  func.func @transform_2(%arg0: i32, %arg1: i32, %arg2: memref<2xi32, #tpu.memory_space<smem>>) -> (i32, i32) {
    %c0_i32 = arith.constant 0 : i32
    %c0_i32_0 = arith.constant 0 : i32
    %c0_i32_1 = arith.constant 0 : i32
    return %c0_i32, %c0_i32_0 : i32, i32
  }
  func.func @transform_3(%arg0: i32, %arg1: i32, %arg2: memref<2xi32, #tpu.memory_space<smem>>) -> (i32, i32) {
    %c0_i32 = arith.constant 0 : i32
    %c0_i32_0 = arith.constant 0 : i32
    %c0_i32_1 = arith.constant 0 : i32
    return %c0_i32, %c0_i32_0 : i32, i32
  }
  func.func @transform_4(%arg0: i32, %arg1: i32, %arg2: memref<2xi32, #tpu.memory_space<smem>>) -> (i32, i32) {
    %c0_i32 = arith.constant 0 : i32
    %c0_i32_0 = arith.constant 0 : i32
    %c0_i32_1 = arith.constant 0 : i32
    return %c0_i32, %c0_i32_0 : i32, i32
  }
  func.func @transform_5(%arg0: i32, %arg1: i32, %arg2: memref<2xi32, #tpu.memory_space<smem>>) -> (i32, i32) {
    %c0_i32 = arith.constant 0 : i32
    %c0_i32_0 = arith.constant 0 : i32
    %c0_i32_1 = arith.constant 0 : i32
    return %c0_i32, %c0_i32_0 : i32, i32
  }
  func.func @transform_6(%arg0: i32, %arg1: i32, %arg2: memref<2xi32, #tpu.memory_space<smem>>) -> (i32, i32) {
    %c0_i32 = arith.constant 0 : i32
    %c0_i32_0 = arith.constant 0 : i32
    %c0_i32_1 = arith.constant 0 : i32
    return %c0_i32, %c0_i32_0 : i32, i32
  }
  func.func @transform_7(%arg0: i32, %arg1: i32, %arg2: memref<2xi32, #tpu.memory_space<smem>>) -> (i32, i32) {
    %c0_i32 = arith.constant 0 : i32
    %c0_i32_0 = arith.constant 0 : i32
    %c0_i32_1 = arith.constant 0 : i32
    return %c0_i32, %c0_i32_0 : i32, i32
  }
  func.func @transform_8(%arg0: i32, %arg1: i32, %arg2: memref<2xi32, #tpu.memory_space<smem>>) -> (i32, i32) {
    %c0_i32 = arith.constant 0 : i32
    %c0_i32_0 = arith.constant 0 : i32
    %c0_i32_1 = arith.constant 0 : i32
    return %c0_i32, %c0_i32_0 : i32, i32
  }
  func.func @transform_9(%arg0: i32, %arg1: i32, %arg2: memref<2xi32, #tpu.memory_space<smem>>) -> (i32, i32, i32) {
    %c0_i32 = arith.constant 0 : i32
    %c0_i32_0 = arith.constant 0 : i32
    return %arg0, %arg1, %c0_i32 : i32, i32, i32
  }
}

</mosaic_0001>

<llo_original>
// kernel: tpu_custom_call.1
$region0: #{tpu_custom_call.1}
  #allocation0 [shape = 'u32[]', space=smem, size = 0x4, offset = 0x4, fixed_abs, tag = 'smem constant byte address 0x4 - core index']
  #allocation1 [shape = 'u32[144,128]{1,0:T(1,128)}', space=vmem, size = 0x12000, scoped, tag = 'internal scratch']
  #allocation2 [shape = 'f32[32,32]{1,0:T(8,128)}', space=vmem, size = 0x4000, scoped, tag = 'scratch operand']
  #allocation3 [shape = 'bf16[32,32]{1,0:T(16,128)(2,1)}', space=vmem, size = 0x2000, scoped, tag = 'scratch operand']
  #allocation4 [shape = 'bf16[32,32]{1,0:T(16,128)(2,1)}', space=vmem, size = 0x2000, scoped, tag = 'scratch operand']
  #allocation5 [shape = 'f32[42,32]{1,0:T(8,128)}', space=vmem, size = 0x6000, scoped, tag = 'scratch operand']
  #allocation6 [shape = 's32[1]{0}', space=sflag, size = 0x4, scoped, tag = 'scoped memory for tpu_custom_call.1']
  #allocation7 [shape = 'u8[512]{0}', space=smem, size = 0x200, scoped, tag = 'prefetched SMEM operand 0']
  %s0 = inlined_call_operand.hbm [shape: s32[2], index: 0, kind: input, shape index: {}]
  %s1 = inlined_call_operand.hbm [shape: f32[2,32,48], index: 1, kind: input, shape index: {}]
  %s2 = inlined_call_operand.vmem [shape: f32[2,48], index: 2, kind: input, shape index: {}]
  %s3 = inlined_call_operand.vmem [shape: bf16[48,96], index: 3, kind: input, shape index: {}]
  %s4 = inlined_call_operand.vmem [shape: f32[1,96], index: 4, kind: input, shape index: {}]
  %s5 = inlined_call_operand.hbm [shape: bf16[32,32], index: 5, kind: input, shape index: {}]
  %s6 = inlined_call_operand.vmem [shape: f32[17,32], index: 6, kind: input, shape index: {}]
  %s7 = inlined_call_operand.hbm [shape: bf16[32,64], index: 7, kind: input, shape index: {}]
  %s8 = inlined_call_operand.vmem [shape: f32[1,64], index: 8, kind: input, shape index: {}]
  %s9 = inlined_call_operand.vmem [shape: bf16[64,32], index: 9, kind: input, shape index: {}]
  %s10 = inlined_call_operand.hbm [shape: f32[2,32,32], index: 10, kind: output, shape index: {}]
  %s11 = sld [smem:[#allocation0]]
  $region85: #{tpu_custom_call.1} parent=0
    _
  %s13 = ssub.s32 1, %s11
  %s14 = scalar_select 0, %s13, %s11
  %16 = dma.hbm_to_smem %s0, 16, [#allocation7], [#allocation6]
  %17 = dma.done [#allocation6], 16
  %18 = sfence
  $region1: #{tpu_custom_call.1} parent=0
    #allocation8 [shape = 'u8[32768]{0}', space=vmem, size = 0x8000, scoped, tag = 'input window, operand 1']
    #allocation9 [shape = 's32[2]{0}', space=sflag, size = 0x8, scoped, tag = 'scoped memory for tpu_custom_call.1']
    #allocation10 [shape = 's32[2]{0}', space=sflag, size = 0x8, scoped, tag = 'scoped memory for tpu_custom_call.1']
    #allocation11 [shape = 'u8[8192]{0}', space=vmem, size = 0x2000, scoped, tag = 'input window, operand 5, single buffered']
    #allocation12 [shape = 's32[1]{0}', space=sflag, size = 0x4, scoped, tag = 'scoped memory for tpu_custom_call.1']
    #allocation13 [shape = 'u8[8192]{0}', space=vmem, size = 0x2000, scoped, tag = 'input window, operand 7, single buffered']
    #allocation14 [shape = 'u8[16384]{0}', space=vmem, size = 0x4000, scoped, tag = 'output window, operand 0']
    %19 = vsyncpa [#allocation9], 0
    %s20 = scalar_lea.sflag [#allocation9], 1
    %21 = vsyncpa %s20, 0
    %22 = vsyncpa [#allocation12], 0
    %23 = vsyncpa [#allocation10], 0
    %s24 = scalar_lea.sflag [#allocation10], 1
    %25 = vsyncpa %s24, 0
    loop: start=0, step=1, limit=6
    $region2: #{tpu_custom_call.1} parent=1 // loop_pre_header
      _
    $region3: #{tpu_custom_call.1} parent=1 // loop_header
      %s27 = sphi 0, %s31
      %p28 = scmp.ge.s32.totalorder %s27, 6
      %s34 = sphi 0, %s46
      %s35 = sphi 0, %s42
      %s36 = sphi 0, %s34
      %s37 = sphi 0, %s35
      %s38 = sphi 0, %s36
      %s39 = sphi 0, %s37
      %s49 = sphi 0, %s51
      %s52 = sphi 0, %s49
      %s53 = sphi 0, %s52
      %s69 = sphi 0, %s53
      %s73 = sphi 0, %s73
      %s75 = sphi 0, %s73
      %s76 = sphi 0, %s75
      %s90 = sphi 0, %s76
      %s94 = sphi 0, %s94
      %s96 = sphi 0, %s94
      %s97 = sphi 0, %s96
      %s111 = sphi 0, %s97
      %s115 = sphi 0, %s115
      %s117 = sphi 0, %s115
      %s118 = sphi 0, %s117
      %s132 = sphi 0, %s118
      %s136 = sphi 0, %s136
      %s138 = sphi 0, %s136
      %s139 = sphi 0, %s138
      %s153 = sphi 0, %s139
      %s157 = sphi 0, %s157
      %s159 = sphi 0, %s157
      %s160 = sphi 0, %s159
      %s174 = sphi 0, %s160
      %s178 = sphi 0, %s178
      %s180 = sphi 0, %s178
      %s181 = sphi 0, %s180
      %s195 = sphi 0, %s181
      %s199 = sphi 0, %s199
      %s201 = sphi 0, %s199
      %s202 = sphi 0, %s201
      %s216 = sphi 0, %s202
      %s220 = sphi 0, %s220
      %s222 = sphi 0, %s220
      %s223 = sphi 0, %s222
      %s237 = sphi 0, %s223
      %s245 = sphi 0, %s247
      %s248 = sphi 0, %s245
      %s249 = sphi 0, %s248
      %s265 = sphi 0, %s249
    $region4: #{tpu_custom_call.1} parent=1 // loop_header_branch
      %30 = sbr.rel (%p28) target = $region8
    $region5: #{tpu_custom_call.1} parent=1 // loop_body
      %s32 = ssub.s32 %s27, 1
      %s33 = ssub.s32 %s27, 2
      %s40 = sadd.s32 1, %s35
      %p41 = scmp.ge.s32.totalorder %s40, 2
      %s42 = scalar_select %p41, 0, %s40
      %s43 = sadd.s32 1, %s34
      %s44 = scalar_select %p41, %s43, %s34
      %p45 = scmp.ge.s32.totalorder %s44, 2
      %s46 = scalar_select %p45, 0, %s44
      %s47 = ssub.s32 %s34, %s46
      %p48 = scmp.eq.s32.totalorder %s47, 0
      %s50 = sadd.s32 %s49, 1
      %s51 = scalar_select %p48, %s49, %s50
      %p54 = pneg %p48
      %p55 = scmp.eq.s32.totalorder %s27, 3
      %p56 = por %p54, %p55
      %p57 = scmp.ne.s32.totalorder %s49, %s52
      %p58 = scmp.eq.s32.totalorder %s27, 0
      %p59 = por %p57, %p58
      %p60 = scmp.ne.s32.totalorder %s49, %s52
      %p61 = scmp.eq.s32.totalorder %s32, 3
      %p62 = por %p60, %p61
      %p63 = scmp.ne.s32.totalorder %s52, %s53
      %p64 = scmp.eq.s32.totalorder %s32, 0
      %p65 = por %p63, %p64
      %p66 = scmp.ne.s32.totalorder %s52, %s53
      %p67 = scmp.eq.s32.totalorder %s33, 3
      %p68 = por %p66, %p67
      %p70 = scmp.ne.s32.totalorder %s53, %s69
      %p71 = scmp.eq.s32.totalorder %s33, 0
      %p72 = por %p70, %p71
      %s74 = sadd.s32 %s73, 1
      %p77 = scmp.eq.s32.totalorder %s27, 3
      %p78 = scmp.ne.s32.totalorder %s73, %s75
      %p79 = scmp.eq.s32.totalorder %s27, 0
      %p80 = por %p78, %p79
      %p81 = scmp.ne.s32.totalorder %s73, %s75
      %p82 = scmp.eq.s32.totalorder %s32, 3
      %p83 = por %p81, %p82
      %p84 = scmp.ne.s32.totalorder %s75, %s76
      %p85 = scmp.eq.s32.totalorder %s32, 0
      %p86 = por %p84, %p85
      %p87 = scmp.ne.s32.totalorder %s75, %s76
      %p88 = scmp.eq.s32.totalorder %s33, 3
      %p89 = por %p87, %p88
      %p91 = scmp.ne.s32.totalorder %s76, %s90
      %p92 = scmp.eq.s32.totalorder %s33, 0
      %p93 = por %p91, %p92
      %s95 = sadd.s32 %s94, 1
      %p98 = scmp.eq.s32.totalorder %s27, 3
      %p99 = scmp.ne.s32.totalorder %s94, %s96
      %p100 = scmp.eq.s32.totalorder %s27, 0
      %p101 = por %p99, %p100
      %p102 = scmp.ne.s32.totalorder %s94, %s96
      %p103 = scmp.eq.s32.totalorder %s32, 3
      %p104 = por %p102, %p103
      %p105 = scmp.ne.s32.totalorder %s96, %s97
      %p106 = scmp.eq.s32.totalorder %s32, 0
      %p107 = por %p105, %p106
      %p108 = scmp.ne.s32.totalorder %s96, %s97
      %p109 = scmp.eq.s32.totalorder %s33, 3
      %p110 = por %p108, %p109
      %p112 = scmp.ne.s32.totalorder %s97, %s111
      %p113 = scmp.eq.s32.totalorder %s33, 0
      %p114 = por %p112, %p113
      %s116 = sadd.s32 %s115, 1
      %p119 = scmp.eq.s32.totalorder %s27, 3
      %p120 = scmp.ne.s32.totalorder %s115, %s117
      %p121 = scmp.eq.s32.totalorder %s27, 0
      %p122 = por %p120, %p121
      %p123 = scmp.ne.s32.totalorder %s115, %s117
      %p124 = scmp.eq.s32.totalorder %s32, 3
      %p125 = por %p123, %p124
      %p126 = scmp.ne.s32.totalorder %s117, %s118
      %p127 = scmp.eq.s32.totalorder %s32, 0
      %p128 = por %p126, %p127
      %p129 = scmp.ne.s32.totalorder %s117, %s118
      %p130 = scmp.eq.s32.totalorder %s33, 3
      %p131 = por %p129, %p130
      %p133 = scmp.ne.s32.totalorder %s118, %s132
      %p134 = scmp.eq.s32.totalorder %s33, 0
      %p135 = por %p133, %p134
      %s137 = sadd.s32 %s136, 1
      %p140 = scmp.eq.s32.totalorder %s27, 3
      %p141 = scmp.ne.s32.totalorder %s136, %s138
      %p142 = scmp.eq.s32.totalorder %s27, 0
      %p143 = por %p141, %p142
      %p144 = scmp.ne.s32.totalorder %s136, %s138
      %p145 = scmp.eq.s32.totalorder %s32, 3
      %p146 = por %p144, %p145
      %p147 = scmp.ne.s32.totalorder %s138, %s139
      %p148 = scmp.eq.s32.totalorder %s32, 0
      %p149 = por %p147, %p148
      %p150 = scmp.ne.s32.totalorder %s138, %s139
      %p151 = scmp.eq.s32.totalorder %s33, 3
      %p152 = por %p150, %p151
      %p154 = scmp.ne.s32.totalorder %s139, %s153
      %p155 = scmp.eq.s32.totalorder %s33, 0
      %p156 = por %p154, %p155
      %s158 = sadd.s32 %s157, 1
      %p161 = scmp.eq.s32.totalorder %s27, 3
      %p162 = scmp.ne.s32.totalorder %s157, %s159
      %p163 = scmp.eq.s32.totalorder %s27, 0
      %p164 = por %p162, %p163
      %p165 = scmp.ne.s32.totalorder %s157, %s159
      %p166 = scmp.eq.s32.totalorder %s32, 3
      %p167 = por %p165, %p166
      %p168 = scmp.ne.s32.totalorder %s159, %s160
      %p169 = scmp.eq.s32.totalorder %s32, 0
      %p170 = por %p168, %p169
      %p171 = scmp.ne.s32.totalorder %s159, %s160
      %p172 = scmp.eq.s32.totalorder %s33, 3
      %p173 = por %p171, %p172
      %p175 = scmp.ne.s32.totalorder %s160, %s174
      %p176 = scmp.eq.s32.totalorder %s33, 0
      %p177 = por %p175, %p176
      %s179 = sadd.s32 %s178, 1
      %p182 = scmp.eq.s32.totalorder %s27, 3
      %p183 = scmp.ne.s32.totalorder %s178, %s180
      %p184 = scmp.eq.s32.totalorder %s27, 0
      %p185 = por %p183, %p184
      %p186 = scmp.ne.s32.totalorder %s178, %s180
      %p187 = scmp.eq.s32.totalorder %s32, 3
      %p188 = por %p186, %p187
      %p189 = scmp.ne.s32.totalorder %s180, %s181
      %p190 = scmp.eq.s32.totalorder %s32, 0
      %p191 = por %p189, %p190
      %p192 = scmp.ne.s32.totalorder %s180, %s181
      %p193 = scmp.eq.s32.totalorder %s33, 3
      %p194 = por %p192, %p193
      %p196 = scmp.ne.s32.totalorder %s181, %s195
      %p197 = scmp.eq.s32.totalorder %s33, 0
      %p198 = por %p196, %p197
      %s200 = sadd.s32 %s199, 1
      %p203 = scmp.eq.s32.totalorder %s27, 3
      %p204 = scmp.ne.s32.totalorder %s199, %s201
      %p205 = scmp.eq.s32.totalorder %s27, 0
      %p206 = por %p204, %p205
      %p207 = scmp.ne.s32.totalorder %s199, %s201
      %p208 = scmp.eq.s32.totalorder %s32, 3
      %p209 = por %p207, %p208
      %p210 = scmp.ne.s32.totalorder %s201, %s202
      %p211 = scmp.eq.s32.totalorder %s32, 0
      %p212 = por %p210, %p211
      %p213 = scmp.ne.s32.totalorder %s201, %s202
      %p214 = scmp.eq.s32.totalorder %s33, 3
      %p215 = por %p213, %p214
      %p217 = scmp.ne.s32.totalorder %s202, %s216
      %p218 = scmp.eq.s32.totalorder %s33, 0
      %p219 = por %p217, %p218
      %s221 = sadd.s32 %s220, 1
      %p224 = scmp.eq.s32.totalorder %s27, 3
      %p225 = scmp.ne.s32.totalorder %s220, %s222
      %p226 = scmp.eq.s32.totalorder %s27, 0
      %p227 = por %p225, %p226
      %p228 = scmp.ne.s32.totalorder %s220, %s222
      %p229 = scmp.eq.s32.totalorder %s32, 3
      %p230 = por %p228, %p229
      %p231 = scmp.ne.s32.totalorder %s222, %s223
      %p232 = scmp.eq.s32.totalorder %s32, 0
      %p233 = por %p231, %p232
      %p234 = scmp.ne.s32.totalorder %s222, %s223
      %p235 = scmp.eq.s32.totalorder %s33, 3
      %p236 = por %p234, %p235
      %p238 = scmp.ne.s32.totalorder %s223, %s237
      %p239 = scmp.eq.s32.totalorder %s33, 0
      %p240 = por %p238, %p239
      %s241 = ssub.s32 %s34, %s46
      %s242 = ssub.s32 %s35, %s42
      %s243 = sor.u32 %s241, %s242
      %p244 = scmp.eq.s32.totalorder %s243, 0
      %s246 = sadd.s32 %s245, 1
      %s247 = scalar_select %p244, %s245, %s246
      %p250 = pneg %p244
      %p251 = scmp.eq.s32.totalorder %s27, 3
      %p252 = por %p250, %p251
      %p253 = scmp.ne.s32.totalorder %s245, %s248
      %p254 = scmp.eq.s32.totalorder %s27, 0
      %p255 = por %p253, %p254
      %p256 = scmp.ne.s32.totalorder %s245, %s248
      %p257 = scmp.eq.s32.totalorder %s32, 3
      %p258 = por %p256, %p257
      %p259 = scmp.ne.s32.totalorder %s248, %s249
      %p260 = scmp.eq.s32.totalorder %s32, 0
      %p261 = por %p259, %p260
      %p262 = scmp.ne.s32.totalorder %s248, %s249
      %p263 = scmp.eq.s32.totalorder %s33, 3
      %p264 = por %p262, %p263
      %p266 = scmp.ne.s32.totalorder %s249, %s265
      %p267 = scmp.eq.s32.totalorder %s33, 0
      %p268 = por %p266, %p267
      %p269 = scmp.le.s32.totalorder 1, %s27
      %p270 = scmp.lt.s32.totalorder %s27, 5
      %p271 = pnand %p269, %p270
      %p272 = pneg %p271
      // Predicated region
      $region9: #{tpu_custom_call.1} parent=5 // pred_check
        _
      $region10: #{tpu_custom_call.1} parent=5 // pred_check_branch
        %274 = sbr.rel (%p271) target = $region12
      $region11: #{tpu_custom_call.1} parent=5 // pred_region
        %s275 = ssub.s32 %s27, 1
        // Predicated region
        $region13: #{tpu_custom_call.1} parent=11 // pred_check
          %p276 = pneg %p86
        $region14: #{tpu_custom_call.1} parent=11 // pred_check_branch
          %278 = sbr.rel (%p276) target = $region16
        $region15: #{tpu_custom_call.1} parent=11 // pred_region
          _
        $region16: #{tpu_custom_call.1} parent=11 // pred_fallthru
          _
        // Predicated region
        $region17: #{tpu_custom_call.1} parent=11 // pred_check
          %p279 = pneg %p107
        $region18: #{tpu_custom_call.1} parent=11 // pred_check_branch
          %281 = sbr.rel (%p279) target = $region20
        $region19: #{tpu_custom_call.1} parent=11 // pred_region
          _
        $region20: #{tpu_custom_call.1} parent=11 // pred_fallthru
          _
        // Predicated region
        $region21: #{tpu_custom_call.1} parent=11 // pred_check
          %p282 = pneg %p128
        $region22: #{tpu_custom_call.1} parent=11 // pred_check_branch
          %284 = sbr.rel (%p282) target = $region24
        $region23: #{tpu_custom_call.1} parent=11 // pred_region
          _
        $region24: #{tpu_custom_call.1} parent=11 // pred_fallthru
          _
        // Predicated region
        $region25: #{tpu_custom_call.1} parent=11 // pred_check
          %p285 = pneg %p149
        $region26: #{tpu_custom_call.1} parent=11 // pred_check_branch
          %287 = sbr.rel (%p285) target = $region28
        $region27: #{tpu_custom_call.1} parent=11 // pred_region
          %s289 = ssub.s32 256, 256
          %290 = vsyncadd [#allocation12], %s289
          %s291 = sshll.u32 [#allocation11], 4
          %s292 = int_to_ptr.vmem [resolvable:$true] %s291
          %297 = dma.hbm_to_vmem [thread:$0]  %s5, 256, %s292, [#allocation12], 64, 64, 4
        $region28: #{tpu_custom_call.1} parent=11 // pred_fallthru
          _
        // Predicated region
        $region29: #{tpu_custom_call.1} parent=11 // pred_check
          %p298 = pneg %p170
        $region30: #{tpu_custom_call.1} parent=11 // pred_check_branch
          %300 = sbr.rel (%p298) target = $region32
        $region31: #{tpu_custom_call.1} parent=11 // pred_region
          _
        $region32: #{tpu_custom_call.1} parent=11 // pred_fallthru
          _
        // Predicated region
        $region33: #{tpu_custom_call.1} parent=11 // pred_check
          %p301 = pneg %p191
        $region34: #{tpu_custom_call.1} parent=11 // pred_check_branch
          %303 = sbr.rel (%p301) target = $region36
        $region35: #{tpu_custom_call.1} parent=11 // pred_region
          %s305 = ssub.s32 256, 256
          %306 = vsyncadd [#allocation12], %s305
          %s307 = sshll.u32 [#allocation13], 4
          %s308 = int_to_ptr.vmem [resolvable:$true] %s307
          %313 = dma.hbm_to_vmem [thread:$0]  %s7, 256, %s308, [#allocation12], 64, 64, 4
        $region36: #{tpu_custom_call.1} parent=11 // pred_fallthru
          _
        // Predicated region
        $region37: #{tpu_custom_call.1} parent=11 // pred_check
          %p314 = pneg %p212
        $region38: #{tpu_custom_call.1} parent=11 // pred_check_branch
          %316 = sbr.rel (%p314) target = $region40
        $region39: #{tpu_custom_call.1} parent=11 // pred_region
          _
        $region40: #{tpu_custom_call.1} parent=11 // pred_fallthru
          _
        // Predicated region
        $region41: #{tpu_custom_call.1} parent=11 // pred_check
          %p317 = pneg %p233
        $region42: #{tpu_custom_call.1} parent=11 // pred_check_branch
          %319 = sbr.rel (%p317) target = $region44
        $region43: #{tpu_custom_call.1} parent=11 // pred_region
          _
        $region44: #{tpu_custom_call.1} parent=11 // pred_fallthru
          _
      $region12: #{tpu_custom_call.1} parent=5 // pred_fallthru
        _
      %p320 = scmp.lt.s32.totalorder %s27, 4
      // Predicated region
      $region45: #{tpu_custom_call.1} parent=5 // pred_check
        %p321 = pneg %p320
      $region46: #{tpu_custom_call.1} parent=5 // pred_check_branch
        %323 = sbr.rel (%p321) target = $region48
      $region47: #{tpu_custom_call.1} parent=5 // pred_region
        // Predicated region
        $region49: #{tpu_custom_call.1} parent=47 // pred_check
          %p324 = pneg %p59
        $region50: #{tpu_custom_call.1} parent=47 // pred_check_branch
          %326 = sbr.rel (%p324) target = $region52
        $region51: #{tpu_custom_call.1} parent=47 // pred_region
          %s327 = sand.u32 %s49, 1
          %s328 = scalar_lea.sflag [#allocation9], %s327
          %s329 = sand.u32 %s49, 1
          %s330 = smul.addr %s329, 32
          %s331 = scalar_lea.vmem [#allocation8], %s330
          %s333 = ssub.s32 512, 512
          %334 = vsyncadd %s328, %s333
          %s335 = smul.addr %s34, 4
          %s336 = smul.addr %s335, 128
          %s337 = scalar_lea.hbm %s1, %s336
          %s338 = sshll.u32 %s331, 4
          %s339 = int_to_ptr.vmem [resolvable:$true] %s338
          %344 = dma.hbm_to_vmem [thread:$0]  %s337, 512, %s339, %s328, 128, 128, 8
        $region52: #{tpu_custom_call.1} parent=47 // pred_fallthru
          _
      $region48: #{tpu_custom_call.1} parent=5 // pred_fallthru
        _
      %p345 = scmp.le.s32.totalorder 1, %s27
      %p346 = scmp.lt.s32.totalorder %s27, 5
      %p347 = pnand %p345, %p346
      %p348 = pneg %p347
      // Predicated region
      $region53: #{tpu_custom_call.1} parent=5 // pred_check
        _
      $region54: #{tpu_custom_call.1} parent=5 // pred_check_branch
        %350 = sbr.rel (%p347) target = $region56
      $region55: #{tpu_custom_call.1} parent=5 // pred_region
        %s351 = ssub.s32 %s27, 1
        %s352 = sand.u32 %s52, 1
        %s353 = scalar_lea.sflag [#allocation9], %s352
        %s354 = sand.u32 %s52, 1
        %s355 = smul.addr %s354, 32
        %s356 = scalar_lea.vmem [#allocation8], %s355
        // Predicated region
        $region57: #{tpu_custom_call.1} parent=55 // pred_check
          %p357 = pneg %p65
        $region58: #{tpu_custom_call.1} parent=55 // pred_check_branch
          %359 = sbr.rel (%p357) target = $region60
        $region59: #{tpu_custom_call.1} parent=55 // pred_region
          %360 = dma.done %s353, 512
        $region60: #{tpu_custom_call.1} parent=55 // pred_fallthru
          _
        // Predicated region
        $region61: #{tpu_custom_call.1} parent=55 // pred_check
          %p361 = pneg %p149
        $region62: #{tpu_custom_call.1} parent=55 // pred_check_branch
          %363 = sbr.rel (%p361) target = $region64
        $region63: #{tpu_custom_call.1} parent=55 // pred_region
          %364 = dma.done [#allocation12], 256
        $region64: #{tpu_custom_call.1} parent=55 // pred_fallthru
          _
        // Predicated region
        $region65: #{tpu_custom_call.1} parent=55 // pred_check
          %p365 = pneg %p191
        $region66: #{tpu_custom_call.1} parent=55 // pred_check_branch
          %367 = sbr.rel (%p365) target = $region68
        $region67: #{tpu_custom_call.1} parent=55 // pred_region
          %368 = dma.done [#allocation12], 256
        $region68: #{tpu_custom_call.1} parent=55 // pred_fallthru
          _
        %s369 = sand.u32 %s52, 1
        %s370 = scalar_lea.sflag [#allocation9], %s369
        %s371 = sand.u32 %s52, 1
        %s372 = smul.addr %s371, 32
        %s373 = scalar_lea.vmem [#allocation8], %s372
        %p374 = pneg %p65
        %p375 = pneg %p62
        %p376 = pneg %p86
        %p377 = pneg %p83
        %p378 = pneg %p107
        %p379 = pneg %p104
        %p380 = pneg %p128
        %p381 = pneg %p125
        %p382 = pneg %p149
        %p383 = pneg %p146
        %p384 = pneg %p170
        %p385 = pneg %p167
        %p386 = pneg %p191
        %p387 = pneg %p188
        %p388 = pneg %p212
        %p389 = pneg %p209
        %p390 = pneg %p233
        %p391 = pneg %p230
        %p392 = pneg %p261
        %p393 = pneg %p258
        %s394 = sand.u32 %s248, 1
        %s395 = scalar_lea.sflag [#allocation10], %s394
        %s396 = sand.u32 %s248, 1
        %s397 = smul.addr %s396, 16
        %s398 = scalar_lea.vmem [#allocation14], %s397
        %s399 = smul.u32 2, %s37
        %s401 = sld [smem:[#allocation7 + %s36]]
        %p402 = scmp.eq.s32.totalorder %s37, 0
        // Predicated region
        $region69: #{tpu_custom_call.1} parent=55 // pred_check
          %p403 = pneg %p402
        $region70: #{tpu_custom_call.1} parent=55 // pred_check_branch
          %405 = sbr.rel (%p403) target = $region72
        $region71: #{tpu_custom_call.1} parent=55 // pred_region
          %v406 = vld [vmem:[%s356] sm:$0xff]
          %v407 = vld [vmem:[%s356 + $0x8] sm:$0xff]
          %v408 = vld [vmem:[%s356 + $0x10] sm:$0xff]
          %v409 = vld [vmem:[%s356 + $0x18] sm:$0xff]
          %v410 = vld [vmem:[%s2] sm:$0x1]
          %v411 = vld [vmem:[%s2 + $0x1] sm:$0x1]
          %vm412 = vcmask 392192
          %v413 = vsel %vm412, %v406, 0.0
          %414 = vadd.xlane.f32.xlu0 %v413
          %v415 = vpop.xlane.xlu0 %414
          %v416 = vsel %vm412, %v407, 0.0
          %417 = vadd.xlane.f32.xlu0 %v416
          %v418 = vpop.xlane.xlu0 %417
          %v419 = vsel %vm412, %v408, 0.0
          %420 = vadd.xlane.f32.xlu0 %v419
          %v421 = vpop.xlane.xlu0 %420
          %v422 = vsel %vm412, %v409, 0.0
          %423 = vadd.xlane.f32.xlu0 %v422
          %v424 = vpop.xlane.xlu0 %423
          %v425 = vrcp.pop 48.0
          %v426 = vmul.f32 %v415, %v425
          %v427 = vmul.f32 %v418, %v425
          %v428 = vmul.f32 %v421, %v425
          %v429 = vmul.f32 %v424, %v425
          %v430 = vsub.f32 %v406, %v426
          %v431 = vsub.f32 %v407, %v427
          %v432 = vsub.f32 %v408, %v428
          %v433 = vsub.f32 %v409, %v429
          %v434 = vmul.f32 %v430, %v430
          %v435 = vmul.f32 %v431, %v431
          %v436 = vmul.f32 %v432, %v432
          %v437 = vmul.f32 %v433, %v433
          %v438 = vsel %vm412, %v434, 0.0
          %439 = vadd.xlane.f32.xlu0 %v438
          %v440 = vpop.xlane.xlu0 %439
          %v441 = vsel %vm412, %v435, 0.0
          %442 = vadd.xlane.f32.xlu0 %v441
          %v443 = vpop.xlane.xlu0 %442
          %v444 = vsel %vm412, %v436, 0.0
          %445 = vadd.xlane.f32.xlu0 %v444
          %v446 = vpop.xlane.xlu0 %445
          %v447 = vsel %vm412, %v437, 0.0
          %448 = vadd.xlane.f32.xlu0 %v447
          %v449 = vpop.xlane.xlu0 %448
          %v450 = vmul.f32 %v440, %v425
          %v451 = vmul.f32 %v443, %v425
          %v452 = vmul.f32 %v446, %v425
          %v453 = vmul.f32 %v449, %v425
          %v454 = vadd.f32 %v450, 1e-05
          %v455 = vadd.f32 %v451, 1e-05
          %v456 = vadd.f32 %v452, 1e-05
          %v457 = vadd.f32 %v453, 1e-05
          %v458 = vrsqrt.pop %v454
          %v459 = vrsqrt.pop %v455
          %v460 = vrsqrt.pop %v456
          %v461 = vrsqrt.pop %v457
          %v462 = vmul.f32 %v430, %v458
          %v463 = vmul.f32 %v431, %v459
          %v464 = vmul.f32 %v432, %v460
          %v465 = vmul.f32 %v433, %v461
          %v466 = vlaneseq
          %v467 = vshrl.u32 %v466, 7
          %v468 = vsub.s32 0, %v467
          %v469 = vrot.slane %v410, %v468
          %v470 = vmul.f32 %v462, %v469
          %v471 = vmul.f32 %v463, %v469
          %v472 = vmul.f32 %v464, %v469
          %v473 = vmul.f32 %v465, %v469
          %v474 = vlaneseq
          %v475 = vshrl.u32 %v474, 7
          %v476 = vsub.s32 0, %v475
          %v477 = vrot.slane %v411, %v476
          %v478 = vadd.f32 %v470, %v477
          %v479 = vadd.f32 %v471, %v477
          %v480 = vadd.f32 %v472, %v477
          %v481 = vadd.f32 %v473, %v477
          %v482 = vpack.c.bf16 %v479, %v478
          %v483 = vpack.c.bf16 %v481, %v480
          %v484 = vlaneseq
          %v485 = vshrl.u32 %v484, 7
          %v486 = vadd.s32 %v485, 8
          %v487 = vadd.s32 %v485, 16
          %v488 = vadd.s32 %v485, 24
          %v489 = vstv %s401
          %vm490 = vcmp.lt.s32.totalorder %v485, %v489
          %vm491 = vcmp.lt.s32.totalorder %v486, %v489
          %vm492 = vcmp.lt.s32.totalorder %v487, %v489
          %vm493 = vcmp.lt.s32.totalorder %v488, %v489
          %v494 = vsel %vm490, 1, 0
          %v495 = vsel %vm491, 1, 0
          %v496 = vsel %vm492, 1, 0
          %v497 = vsel %vm493, 1, 0
          %v498 = vcvt.s32.f32 %v494
          %v499 = vcvt.s32.f32 %v495
          %v500 = vcvt.s32.f32 %v496
          %v501 = vcvt.s32.f32 %v497
          %v502 = vld [vmem:[%s3] sm:$0xf]
          %v503 = vld [vmem:[%s3 + $0x4] sm:$0xf]
          %v504 = vld [vmem:[%s3 + $0x8] sm:$0xf]
          %v505 = vld [vmem:[%s3 + $0xc] sm:$0xf]
          %v506 = vld [vmem:[%s3 + $0x10] sm:$0xf]
          %v507 = vld [vmem:[%s3 + $0x14] sm:$0xf]
          %v508 = vld [vmem:[%s4] sm:$0x1]
          %v510 = vlaneseq
          %v511 = vshrl.u32 %v510, 7
          %v512 = vsub.s32 0, %v511
          %v513 = vrot.slane %v508, %v512
          %v521 = vunpack.c.l.b16 %v502
          %v522 = vunpack.c.l.b16 %v503
          %v523 = vunpack.c.l.b16 %v504
          %v524 = vunpack.c.l.b16 %v505
          %v525 = vunpack.c.l.b16 %v506
          %v526 = vunpack.c.l.b16 %v507
          %v527 = vpack.c.b16 %v522, %v521
          %v528 = vpack.c.b16 %v524, %v523
          %v529 = vpack.c.b16 %v526, %v525
          %v534 = vsel %vm412, %v482, 0
          %v537 = vsel %vm412, %v483, 0
          %539 = vmatprep.subr.bf16.mxu0 0
          %540 = vmatpush1.bf16.msra.mxu0 %v527
          %541 = vmatprep.subr.bf16.mxu0 0
          %542 = vmatpush1.bf16.msra.mxu0 %v528
          %543 = vmatprep.subr.bf16.mxu0 0
          %544 = vmatpush1.bf16.msra.mxu0 %v529
          %545 = vmatprep.subr.bf16.mxu0 0
          %546 = vmatpush1.bf16.msra.mxu0 0
          %547 = vmatprep.subr.bf16.mxu0 0
          %548 = vmatpush1.bf16.msra.mxu0 0
          %549 = vmatprep.subr.bf16.mxu0 0
          %550 = vmatpush1.bf16.msra.mxu0 0
          %551 = vmatprep.subr.bf16.mxu0 0
          %552 = vmatpush1.bf16.msra.mxu0 0
          %553 = vmatprep.subr.bf16.mxu0 0
          %554 = vmatpush1.bf16.msra.mxu0 0
          %555 = vmatprep.subr.bf16.mxu0 0
          %556 = vmatpush1.bf16.msra.mxu0 0
          %557 = vmatprep.subr.bf16.mxu0 0
          %558 = vmatpush1.bf16.msra.mxu0 0
          %559 = vmatprep.subr.bf16.mxu0 0
          %560 = vmatpush1.bf16.msra.mxu0 0
          %561 = vmatprep.subr.bf16.mxu0 0
          %562 = vmatpush1.bf16.msra.mxu0 0
          %563 = vmatprep.subr.bf16.mxu0 0
          %564 = vmatpush1.bf16.msra.mxu0 0
          %565 = vmatprep.subr.bf16.mxu0 0
          %566 = vmatpush1.bf16.msra.mxu0 0
          %567 = vmatprep.subr.bf16.mxu0 0
          %568 = vmatpush1.bf16.msra.mxu0 0
          %569 = vmatprep.subr.bf16.mxu0 0
          %570 = vmatpush1.bf16.msra.mxu0 0
          %571 = vmatprep.mubr.bf16.mxu0 0
          %572 = vmatmul.mubr.bf16.gmra.mrb[0].mxu0 %v534
          %v573 = vpop.f32.mrb[0].mxu0
          %v574 = vadd.f32 %v513, %v573
          %v575 = vpop.f32.mrb[0].mxu0
          %v576 = vpop.f32.mrb[0].mxu0
          %v577 = vadd.f32 %v513, %v576
          %v578 = vpop.f32.mrb[0].mxu0
          %579 = vmatprep.mubr.bf16.mxu0 0
          %580 = vmatmul.mubr.bf16.gmra.mrb[0].mxu0 %v537
          %v581 = vpop.f32.mrb[0].mxu0
          %v582 = vadd.f32 %v513, %v581
          %v583 = vpop.f32.mrb[0].mxu0
          %v584 = vpop.f32.mrb[0].mxu0
          %v585 = vadd.f32 %v513, %v584
          %v586 = vpop.f32.mrb[0].mxu0
          %587 = vdwg.mxu0
          %vm588 = vcmask 261120
          %589 = vst.msk [vmem:[#allocation2] sm:$0xff] %vm588, %v574
          %590 = vst.msk [vmem:[#allocation2 + $0x8] sm:$0xff] %vm588, %v577
          %591 = vst.msk [vmem:[#allocation2 + $0x10] sm:$0xff] %vm588, %v582
          %592 = vst.msk [vmem:[#allocation2 + $0x18] sm:$0xff] %vm588, %v585
          %v593 = vld [vmem:[%s3] sm:$0xf]
          %v594 = vld [vmem:[%s3 + $0x4] sm:$0xf]
          %v595 = vld [vmem:[%s3 + $0x8] sm:$0xf]
          %v596 = vld [vmem:[%s3 + $0xc] sm:$0xf]
          %v597 = vld [vmem:[%s3 + $0x10] sm:$0xf]
          %v598 = vld [vmem:[%s3 + $0x14] sm:$0xf]
          %v599 = vld [vmem:[%s4] sm:$0x1]
          %v601 = vlaneseq
          %v602 = vshrl.u32 %v601, 7
          %v603 = vsub.s32 0, %v602
          %v604 = vrot.slane %v599, %v603
          %v611 = vunpack.c.l.b16 %v593
          %v612 = vunpack.c.l.b16 %v594
          %v613 = vunpack.c.l.b16 %v595
          %v614 = vunpack.c.l.b16 %v596
          %v615 = vunpack.c.l.b16 %v597
          %v616 = vunpack.c.l.b16 %v598
          %v617 = vpack.c.b16 %v612, %v611
          %v618 = vpack.c.b16 %v614, %v613
          %v619 = vpack.c.b16 %v616, %v615
          %620 = vrot.lane.b32.xlu0 %v617, 96
          %v621 = vpop.permute.xlu0 %620
          %622 = vrot.lane.b32.xlu0 %v618, 96
          %v623 = vpop.permute.xlu0 %622
          %624 = vrot.lane.b32.xlu0 %v619, 96
          %v625 = vpop.permute.xlu0 %624
          %629 = vrot.lane.b32.xlu0 %v604, 96
          %v630 = vpop.permute.xlu0 %629
          %632 = vmatprep.subr.bf16.mxu0 0
          %633 = vmatpush1.bf16.msra.mxu0 %v621
          %634 = vmatprep.subr.bf16.mxu0 0
          %635 = vmatpush1.bf16.msra.mxu0 %v623
          %636 = vmatprep.subr.bf16.mxu0 0
          %637 = vmatpush1.bf16.msra.mxu0 %v625
          %638 = vmatprep.subr.bf16.mxu0 0
          %639 = vmatpush1.bf16.msra.mxu0 0
          %640 = vmatprep.subr.bf16.mxu0 0
          %641 = vmatpush1.bf16.msra.mxu0 0
          %642 = vmatprep.subr.bf16.mxu0 0
          %643 = vmatpush1.bf16.msra.mxu0 0
          %644 = vmatprep.subr.bf16.mxu0 0
          %645 = vmatpush1.bf16.msra.mxu0 0
          %646 = vmatprep.subr.bf16.mxu0 0
          %647 = vmatpush1.bf16.msra.mxu0 0
          %648 = vmatprep.subr.bf16.mxu0 0
          %649 = vmatpush1.bf16.msra.mxu0 0
          %650 = vmatprep.subr.bf16.mxu0 0
          %651 = vmatpush1.bf16.msra.mxu0 0
          %652 = vmatprep.subr.bf16.mxu0 0
          %653 = vmatpush1.bf16.msra.mxu0 0
          %654 = vmatprep.subr.bf16.mxu0 0
          %655 = vmatpush1.bf16.msra.mxu0 0
          %656 = vmatprep.subr.bf16.mxu0 0
          %657 = vmatpush1.bf16.msra.mxu0 0
          %658 = vmatprep.subr.bf16.mxu0 0
          %659 = vmatpush1.bf16.msra.mxu0 0
          %660 = vmatprep.subr.bf16.mxu0 0
          %661 = vmatpush1.bf16.msra.mxu0 0
          %662 = vmatprep.subr.bf16.mxu0 0
          %663 = vmatpush1.bf16.msra.mxu0 0
          %664 = vmatprep.mubr.bf16.mxu0 0
          %665 = vmatmul.mubr.bf16.gmra.mrb[0].mxu0 %v534
          %v666 = vpop.f32.mrb[0].mxu0
          %v667 = vadd.f32 %v630, %v666
          %v668 = vpop.f32.mrb[0].mxu0
          %v669 = vpop.f32.mrb[0].mxu0
          %v670 = vadd.f32 %v630, %v669
          %v671 = vpop.f32.mrb[0].mxu0
          %672 = vmatprep.mubr.bf16.mxu0 0
          %673 = vmatmul.mubr.bf16.gmra.mrb[0].mxu0 %v537
          %v674 = vpop.f32.mrb[0].mxu0
          %v675 = vadd.f32 %v630, %v674
          %v676 = vpop.f32.mrb[0].mxu0
          %v677 = vpop.f32.mrb[0].mxu0
          %v678 = vadd.f32 %v630, %v677
          %v679 = vpop.f32.mrb[0].mxu0
          %680 = vdwg.mxu0
          %v681 = vpack.c.bf16 %v670, %v667
          %v682 = vpack.c.bf16 %v678, %v675
          %683 = vst.msk [vmem:[#allocation3] sm:$0xff] %vm588, %v681
          %684 = vst.msk [vmem:[#allocation3 + $0x8] sm:$0xff] %vm588, %v682
          %v685 = vld [vmem:[%s3] sm:$0xf]
          %v686 = vld [vmem:[%s3 + $0x4] sm:$0xf]
          %v687 = vld [vmem:[%s3 + $0x8] sm:$0xf]
          %v688 = vld [vmem:[%s3 + $0xc] sm:$0xf]
          %v689 = vld [vmem:[%s3 + $0x10] sm:$0xf]
          %v690 = vld [vmem:[%s3 + $0x14] sm:$0xf]
          %v691 = vld [vmem:[%s4] sm:$0x1]
          %v693 = vlaneseq
          %v694 = vshrl.u32 %v693, 7
          %v695 = vsub.s32 0, %v694
          %v696 = vrot.slane %v691, %v695
          %v703 = vunpack.c.l.b16 %v685
          %v704 = vunpack.c.l.b16 %v686
          %v705 = vunpack.c.l.b16 %v687
          %v706 = vunpack.c.l.b16 %v688
          %v707 = vunpack.c.l.b16 %v689
          %v708 = vunpack.c.l.b16 %v690
          %v709 = vpack.c.b16 %v704, %v703
          %v710 = vpack.c.b16 %v706, %v705
          %v711 = vpack.c.b16 %v708, %v707
          %712 = vrot.lane.b32.xlu0 %v709, 64
          %v713 = vpop.permute.xlu0 %712
          %714 = vrot.lane.b32.xlu0 %v710, 64
          %v715 = vpop.permute.xlu0 %714
          %716 = vrot.lane.b32.xlu0 %v711, 64
          %v717 = vpop.permute.xlu0 %716
          %721 = vrot.lane.b32.xlu0 %v696, 64
          %v722 = vpop.permute.xlu0 %721
          %724 = vmatprep.subr.bf16.mxu0 0
          %725 = vmatpush1.bf16.msra.mxu0 %v713
          %726 = vmatprep.subr.bf16.mxu0 0
          %727 = vmatpush1.bf16.msra.mxu0 %v715
          %728 = vmatprep.subr.bf16.mxu0 0
          %729 = vmatpush1.bf16.msra.mxu0 %v717
          %730 = vmatprep.subr.bf16.mxu0 0
          %731 = vmatpush1.bf16.msra.mxu0 0
          %732 = vmatprep.subr.bf16.mxu0 0
          %733 = vmatpush1.bf16.msra.mxu0 0
          %734 = vmatprep.subr.bf16.mxu0 0
          %735 = vmatpush1.bf16.msra.mxu0 0
          %736 = vmatprep.subr.bf16.mxu0 0
          %737 = vmatpush1.bf16.msra.mxu0 0
          %738 = vmatprep.subr.bf16.mxu0 0
          %739 = vmatpush1.bf16.msra.mxu0 0
          %740 = vmatprep.subr.bf16.mxu0 0
          %741 = vmatpush1.bf16.msra.mxu0 0
          %742 = vmatprep.subr.bf16.mxu0 0
          %743 = vmatpush1.bf16.msra.mxu0 0
          %744 = vmatprep.subr.bf16.mxu0 0
          %745 = vmatpush1.bf16.msra.mxu0 0
          %746 = vmatprep.subr.bf16.mxu0 0
          %747 = vmatpush1.bf16.msra.mxu0 0
          %748 = vmatprep.subr.bf16.mxu0 0
          %749 = vmatpush1.bf16.msra.mxu0 0
          %750 = vmatprep.subr.bf16.mxu0 0
          %751 = vmatpush1.bf16.msra.mxu0 0
          %752 = vmatprep.subr.bf16.mxu0 0
          %753 = vmatpush1.bf16.msra.mxu0 0
          %754 = vmatprep.subr.bf16.mxu0 0
          %755 = vmatpush1.bf16.msra.mxu0 0
          %756 = vmatprep.mubr.bf16.mxu0 0
          %757 = vmatmul.mubr.bf16.gmra.mrb[0].mxu0 %v534
          %v758 = vpop.f32.mrb[0].mxu0
          %v759 = vadd.f32 %v722, %v758
          %v760 = vpop.f32.mrb[0].mxu0
          %v761 = vpop.f32.mrb[0].mxu0
          %v762 = vadd.f32 %v722, %v761
          %v763 = vpop.f32.mrb[0].mxu0
          %764 = vmatprep.mubr.bf16.mxu0 0
          %765 = vmatmul.mubr.bf16.gmra.mrb[0].mxu0 %v537
          %v766 = vpop.f32.mrb[0].mxu0
          %v767 = vadd.f32 %v722, %v766
          %v768 = vpop.f32.mrb[0].mxu0
          %v769 = vpop.f32.mrb[0].mxu0
          %v770 = vadd.f32 %v722, %v769
          %v771 = vpop.f32.mrb[0].mxu0
          %772 = vdwg.mxu0
          %v773 = vmul.f32 %v759, %v498
          %v774 = vmul.f32 %v762, %v499
          %v775 = vmul.f32 %v767, %v500
          %v776 = vmul.f32 %v770, %v501
          %v777 = vpack.c.bf16 %v774, %v773
          %v778 = vpack.c.bf16 %v776, %v775
          %779 = vst.msk [vmem:[#allocation4] sm:$0xff] %vm588, %v777
          %780 = vst.msk [vmem:[#allocation4 + $0x8] sm:$0xff] %vm588, %v778
          %781 = vst.msk [vmem:[#allocation5] sm:$0xff] %vm588, 0.0
          %782 = vst.msk [vmem:[#allocation5 + $0x8] sm:$0xff] %vm588, 0.0
          %783 = vst.msk [vmem:[#allocation5 + $0x10] sm:$0xff] %vm588, 0.0
          %784 = vst.msk [vmem:[#allocation5 + $0x18] sm:$0xff] %vm588, 0.0
          %785 = vst.msk [vmem:[#allocation5 + $0x20] sm:$0xff] %vm588, 0.0
          %vm786 = vcmask 254976
          %787 = vst.msk [vmem:[#allocation5 + $0x28] sm:$0x3] %vm786, 0.0
          %788 = vst.msk [vmem:[#allocation5 + $0x5] sm:$0xff] %vm588, %v773
          %789 = vst.msk [vmem:[#allocation5 + $0xd] sm:$0xff] %vm588, %v774
          %790 = vst.msk [vmem:[#allocation5 + $0x15] sm:$0xff] %vm588, %v775
          %791 = vst.msk [vmem:[#allocation5 + $0x1d] sm:$0xff] %vm588, %v776
        $region72: #{tpu_custom_call.1} parent=55 // pred_fallthru
          _
        %s792 = smul.u32 %s37, 16
        %v793 = vlaneseq
        %v794 = vshrl.u32 %v793, 7
        %v795 = vadd.s32 %v794, 8
        %v796 = vstv %s792
        %v797 = vadd.s32 %v796, %v794
        %v798 = vadd.s32 %v796, %v795
        %v799 = vstv %s401
        %vm800 = vcmp.lt.s32.totalorder %v797, %v799
        %vm801 = vcmp.lt.s32.totalorder %v798, %v799
        %v802 = vsel %vm800, 1, 0
        %v803 = vsel %vm801, 1, 0
        %v804 = vcvt.s32.f32 %v802
        %v805 = vcvt.s32.f32 %v803
        %v806 = vlaneseq
        %v807 = vand.u32 %v806, 127
        %vm808 = vcmp.lt.s32.totalorder %v807, %v799
        %v809 = vld [vmem:[%s6] sm:$0xff]
        %v810 = vld [vmem:[%s6 + $0x8] sm:$0xff]
        %v811 = vld [vmem:[%s6 + $0x10] sm:$0x1]
        %s812 = scalar_lea.vmem [#allocation5], %s792
        %v813 = vld [vmem:[%s812] sm:$0xff]
        %v814 = vld [vmem:[%s812 + $0x8] sm:$0xff]
        %v815 = vld [vmem:[%s812 + $0x10] sm:$0xff]
        %v816 = vld [vmem:[%s812 + $0x18] sm:$0x3]
        %v817 = vlaneseq
        %v818 = vshrl.u32 %v817, 7
        %v819 = vsub.s32 6, %v818
        %v820 = vrot.slane %v809, %v819
        %v821 = vmul.f32 %v813, %v820
        %v822 = vmul.f32 %v814, %v820
        %v823 = vadd.f32 %v821, 0.0
        %v824 = vadd.f32 %v822, 0.0
        %v825 = vlaneseq
        %v826 = vshrl.u32 %v825, 7
        %v827 = vsub.s32 7, %v826
        %v828 = vrot.slane %v809, %v827
        %v829 = vmul.f32 %v813, %v828
        %v830 = vmul.f32 %v814, %v828
        %v831 = vmul.f32 %v815, %v828
        %vm835 = vcmask 1046528
        %v836 = vrot.slane %v829, 1
        %v837 = vrot.slane %v830, 1
        %v838 = vsel %vm835, %v836, %v837
        %v839 = vrot.slane %v831, 1
        %v840 = vsel %vm835, %v837, %v839
        %v843 = vadd.f32 %v823, %v838
        %v844 = vadd.f32 %v824, %v840
        %v845 = vlaneseq
        %v846 = vshrl.u32 %v845, 7
        %v847 = vsub.s32 0, %v846
        %v848 = vrot.slane %v810, %v847
        %v849 = vmul.f32 %v813, %v848
        %v850 = vmul.f32 %v814, %v848
        %v851 = vmul.f32 %v815, %v848
        %vm855 = vcmask 1045504
        %v856 = vrot.slane %v849, 2
        %v857 = vrot.slane %v850, 2
        %v858 = vsel %vm855, %v856, %v857
        %v859 = vrot.slane %v851, 2
        %v860 = vsel %vm855, %v857, %v859
        %v863 = vadd.f32 %v843, %v858
        %v864 = vadd.f32 %v844, %v860
        %v865 = vlaneseq
        %v866 = vshrl.u32 %v865, 7
        %v867 = vsub.s32 1, %v866
        %v868 = vrot.slane %v810, %v867
        %v869 = vmul.f32 %v813, %v868
        %v870 = vmul.f32 %v814, %v868
        %v871 = vmul.f32 %v815, %v868
        %vm875 = vcmask 1044480
        %v876 = vrot.slane %v869, 3
        %v877 = vrot.slane %v870, 3
        %v878 = vsel %vm875, %v876, %v877
        %v879 = vrot.slane %v871, 3
        %v880 = vsel %vm875, %v877, %v879
        %v883 = vadd.f32 %v863, %v878
        %v884 = vadd.f32 %v864, %v880
        %v885 = vlaneseq
        %v886 = vshrl.u32 %v885, 7
        %v887 = vsub.s32 2, %v886
        %v888 = vrot.slane %v810, %v887
        %v889 = vmul.f32 %v813, %v888
        %v890 = vmul.f32 %v814, %v888
        %v891 = vmul.f32 %v815, %v888
        %vm895 = vcmask 1043456
        %v896 = vrot.slane %v889, 4
        %v897 = vrot.slane %v890, 4
        %v898 = vsel %vm895, %v896, %v897
        %v899 = vrot.slane %v891, 4
        %v900 = vsel %vm895, %v897, %v899
        %v903 = vadd.f32 %v883, %v898
        %v904 = vadd.f32 %v884, %v900
        %v905 = vlaneseq
        %v906 = vshrl.u32 %v905, 7
        %v907 = vsub.s32 3, %v906
        %v908 = vrot.slane %v810, %v907
        %v909 = vmul.f32 %v813, %v908
        %v910 = vmul.f32 %v814, %v908
        %v911 = vmul.f32 %v815, %v908
        %vm915 = vcmask 1042432
        %v916 = vrot.slane %v909, 5
        %v917 = vrot.slane %v910, 5
        %v918 = vsel %vm915, %v916, %v917
        %v919 = vrot.slane %v911, 5
        %v920 = vsel %vm915, %v917, %v919
        %v923 = vadd.f32 %v903, %v918
        %v924 = vadd.f32 %v904, %v920
        %v925 = vlaneseq
        %v926 = vshrl.u32 %v925, 7
        %v927 = vsub.s32 4, %v926
        %v928 = vrot.slane %v810, %v927
        %v929 = vmul.f32 %v813, %v928
        %v930 = vmul.f32 %v814, %v928
        %v931 = vmul.f32 %v815, %v928
        %vm935 = vcmask 1041408
        %v936 = vrot.slane %v929, 6
        %v937 = vrot.slane %v930, 6
        %v938 = vsel %vm935, %v936, %v937
        %v939 = vrot.slane %v931, 6
        %v940 = vsel %vm935, %v937, %v939
        %v943 = vadd.f32 %v923, %v938
        %v944 = vadd.f32 %v924, %v940
        %v945 = vlaneseq
        %v946 = vshrl.u32 %v945, 7
        %v947 = vsub.s32 5, %v946
        %v948 = vrot.slane %v810, %v947
        %v949 = vmul.f32 %v813, %v948
        %v950 = vmul.f32 %v814, %v948
        %v951 = vmul.f32 %v815, %v948
        %vm955 = vcmask 1040384
        %v956 = vrot.slane %v949, 7
        %v957 = vrot.slane %v950, 7
        %v958 = vsel %vm955, %v956, %v957
        %v959 = vrot.slane %v951, 7
        %v960 = vsel %vm955, %v957, %v959
        %v963 = vadd.f32 %v943, %v958
        %v964 = vadd.f32 %v944, %v960
        %v965 = vlaneseq
        %v966 = vshrl.u32 %v965, 7
        %v967 = vsub.s32 6, %v966
        %v968 = vrot.slane %v810, %v967
        %v969 = vmul.f32 %v814, %v968
        %v970 = vmul.f32 %v815, %v968
        %v971 = vadd.f32 %v963, %v969
        %v972 = vadd.f32 %v964, %v970
        %v973 = vlaneseq
        %v974 = vshrl.u32 %v973, 7
        %v975 = vsub.s32 7, %v974
        %v976 = vrot.slane %v810, %v975
        %v977 = vmul.f32 %v814, %v976
        %v978 = vmul.f32 %v815, %v976
        %v979 = vmul.f32 %v816, %v976
        %v983 = vrot.slane %v977, 1
        %v984 = vrot.slane %v978, 1
        %v985 = vsel %vm835, %v983, %v984
        %v986 = vrot.slane %v979, 1
        %v987 = vsel %vm835, %v984, %v986
        %v990 = vadd.f32 %v971, %v985
        %v991 = vadd.f32 %v972, %v987
        %v992 = vlaneseq
        %v993 = vshrl.u32 %v992, 7
        %v994 = vsub.s32 0, %v993
        %v995 = vrot.slane %v811, %v994
        %v996 = vmul.f32 %v814, %v995
        %v997 = vmul.f32 %v815, %v995
        %v998 = vmul.f32 %v816, %v995
        %v1002 = vrot.slane %v996, 2
        %v1003 = vrot.slane %v997, 2
        %v1004 = vsel %vm855, %v1002, %v1003
        %v1005 = vrot.slane %v998, 2
        %v1006 = vsel %vm855, %v1003, %v1005
        %v1009 = vadd.f32 %v990, %v1004
        %v1010 = vadd.f32 %v991, %v1006
        %v1014 = vrot.slane %v813, 5
        %v1015 = vrot.slane %v814, 5
        %v1016 = vsel %vm915, %v1014, %v1015
        %v1017 = vrot.slane %v815, 5
        %v1018 = vsel %vm915, %v1015, %v1017
        %v1021 = vadd.f32 %v1009, %v1016
        %v1022 = vadd.f32 %v1010, %v1018
        %v1023 = vmul.f32 %v1021, %v804
        %v1024 = vmul.f32 %v1022, %v805
        %s1025 = scalar_lea.vmem [#allocation2], %s792
        %v1026 = vld [vmem:[%s1025] sm:$0xff]
        %v1027 = vld [vmem:[%s1025 + $0x8] sm:$0xff]
        %v1028 = vpack.c.bf16 %v1027, %v1026
        %v1029 = vld [vmem:[#allocation3] sm:$0xff]
        %v1030 = vld [vmem:[#allocation3 + $0x8] sm:$0xff]
        %v1031 = vld [vmem:[#allocation4] sm:$0xff]
        %v1032 = vld [vmem:[#allocation4 + $0x8] sm:$0xff]
        %vm1033 = vcmask 64512
        %v1035 = vsel %vm1033, %v1028, 0
        %v1038 = vsel %vm1033, %v1029, 0
        %v1041 = vsel %vm1033, %v1030, 0
        %1043 = vmatprep.subr.bf16.mxu0 0
        %1044 = vmatpush1.bf16.xpose.msra.mxu0 %v1038
        %1045 = vmatprep.subr.bf16.mxu0 0
        %1046 = vmatpush1.bf16.xpose.msra.mxu0 %v1041
        %1047 = vmatprep.subr.bf16.mxu0 0
        %1048 = vmatpush1.bf16.xpose.msra.mxu0 0
        %1049 = vmatprep.subr.bf16.mxu0 0
        %1050 = vmatpush1.bf16.xpose.msra.mxu0 0
        %1051 = vmatprep.subr.bf16.mxu0 0
        %1052 = vmatpush1.bf16.xpose.msra.mxu0 0
        %1053 = vmatprep.subr.bf16.mxu0 0
        %1054 = vmatpush1.bf16.xpose.msra.mxu0 0
        %1055 = vmatprep.subr.bf16.mxu0 0
        %1056 = vmatpush1.bf16.xpose.msra.mxu0 0
        %1057 = vmatprep.subr.bf16.mxu0 0
        %1058 = vmatpush1.bf16.xpose.msra.mxu0 0
        %1059 = vmatprep.subr.bf16.mxu0 0
        %1060 = vmatpush1.bf16.xpose.msra.mxu0 0
        %1061 = vmatprep.subr.bf16.mxu0 0
        %1062 = vmatpush1.bf16.xpose.msra.mxu0 0
        %1063 = vmatprep.subr.bf16.mxu0 0
        %1064 = vmatpush1.bf16.xpose.msra.mxu0 0
        %1065 = vmatprep.subr.bf16.mxu0 0
        %1066 = vmatpush1.bf16.xpose.msra.mxu0 0
        %1067 = vmatprep.subr.bf16.mxu0 0
        %1068 = vmatpush1.bf16.xpose.msra.mxu0 0
        %1069 = vmatprep.subr.bf16.mxu0 0
        %1070 = vmatpush1.bf16.xpose.msra.mxu0 0
        %1071 = vmatprep.subr.bf16.mxu0 0
        %1072 = vmatpush1.bf16.xpose.msra.mxu0 0
        %1073 = vmatprep.subr.bf16.mxu0 0
        %1074 = vmatpush1.bf16.xpose.msra.mxu0 0
        %1075 = vmatprep.mubr.bf16.mxu0 0
        %1076 = vmatmul.mubr.bf16.gmra.mrb[0].mxu0 %v1035
        %v1077 = vpop.f32.mrb[0].mxu0
        %v1078 = vadd.f32 0.0, %v1077
        %v1079 = vpop.f32.mrb[0].mxu0
        %v1080 = vpop.f32.mrb[0].mxu0
        %v1081 = vadd.f32 0.0, %v1080
        %v1082 = vpop.f32.mrb[0].mxu0
        %1083 = vdwg.mxu0
        %v1084 = vsel %vm808, 1, 0
        %vm1085 = vcmp.eq.s32.totalorder %v1084, 1
        %v1086 = vsel %vm1085, %v1078, -1e+30
        %v1087 = vsel %vm1085, %v1081, -1e+30
        %vm1088 = vcmask 261120
        %v1089 = vsel %vm1088, %v1086, -inf
        %1090 = vmax.xlane.f32.xlu0 %v1089
        %v1091 = vpop.xlane.xlu0 %1090
        %v1092 = vsel %vm1088, %v1087, -inf
        %1093 = vmax.xlane.f32.xlu0 %v1092
        %v1094 = vpop.xlane.xlu0 %1093
        %v1095 = vsub.f32 %v1086, %v1091
        %v1096 = vsub.f32 %v1087, %v1094
        %v1097 = vmul.f32 %v1095, 1.442695
        %v1098 = vpow.pop %v1097
        %v1099 = vmul.f32 %v1096, 1.442695
        %v1100 = vpow.pop %v1099
        %v1101 = vsel %vm1088, %v1098, 0.0
        %1102 = vadd.xlane.f32.xlu0 %v1101
        %v1103 = vpop.xlane.xlu0 %1102
        %v1104 = vsel %vm1088, %v1100, 0.0
        %1105 = vadd.xlane.f32.xlu0 %v1104
        %v1106 = vpop.xlane.xlu0 %1105
        %v1107 = vrcp.pop %v1103
        %v1108 = vrcp.pop %v1106
        %v1109 = vpack.c.bf16 %v1100, %v1098
        %v1111 = vsel %vm1088, %v1109, 0
        %1113 = vmatprep.subr.bf16.mxu0 0
        %1114 = vmatpush1.bf16.msra.mxu0 %v1031
        %1115 = vmatprep.subr.bf16.mxu0 0
        %1116 = vmatpush1.bf16.msra.mxu0 %v1032
        %1117 = vmatprep.subr.bf16.mxu0 0
        %1118 = vmatpush1.bf16.msra.mxu0 0
        %1119 = vmatprep.subr.bf16.mxu0 0
        %1120 = vmatpush1.bf16.msra.mxu0 0
        %1121 = vmatprep.subr.bf16.mxu0 0
        %1122 = vmatpush1.bf16.msra.mxu0 0
        %1123 = vmatprep.subr.bf16.mxu0 0
        %1124 = vmatpush1.bf16.msra.mxu0 0
        %1125 = vmatprep.subr.bf16.mxu0 0
        %1126 = vmatpush1.bf16.msra.mxu0 0
        %1127 = vmatprep.subr.bf16.mxu0 0
        %1128 = vmatpush1.bf16.msra.mxu0 0
        %1129 = vmatprep.subr.bf16.mxu0 0
        %1130 = vmatpush1.bf16.msra.mxu0 0
        %1131 = vmatprep.subr.bf16.mxu0 0
        %1132 = vmatpush1.bf16.msra.mxu0 0
        %1133 = vmatprep.subr.bf16.mxu0 0
        %1134 = vmatpush1.bf16.msra.mxu0 0
        %1135 = vmatprep.subr.bf16.mxu0 0
        %1136 = vmatpush1.bf16.msra.mxu0 0
        %1137 = vmatprep.subr.bf16.mxu0 0
        %1138 = vmatpush1.bf16.msra.mxu0 0
        %1139 = vmatprep.subr.bf16.mxu0 0
        %1140 = vmatpush1.bf16.msra.mxu0 0
        %1141 = vmatprep.subr.bf16.mxu0 0
        %1142 = vmatpush1.bf16.msra.mxu0 0
        %1143 = vmatprep.subr.bf16.mxu0 0
        %1144 = vmatpush1.bf16.msra.mxu0 0
        %1145 = vmatprep.mubr.bf16.mxu0 0
        %1146 = vmatmul.mubr.bf16.gmra.mrb[0].mxu0 %v1111
        %v1147 = vpop.f32.mrb[0].mxu0
        %v1148 = vadd.f32 0.0, %v1147
        %v1149 = vpop.f32.mrb[0].mxu0
        %v1150 = vpop.f32.mrb[0].mxu0
        %v1151 = vadd.f32 0.0, %v1150
        %v1152 = vpop.f32.mrb[0].mxu0
        %1153 = vdwg.mxu0
        %v1154 = vmul.f32 %v1148, %v1107
        %v1155 = vmul.f32 %v1151, %v1108
        %1157 = vrot.lane.b32.xlu0 %v1028, 120
        %v1158 = vpop.permute.xlu0 %1157
        %1161 = vrot.lane.b32.xlu0 %v1029, 120
        %v1162 = vpop.permute.xlu0 %1161
        %1163 = vrot.lane.b32.xlu0 %v1030, 120
        %v1164 = vpop.permute.xlu0 %1163
        %v1166 = vsel %vm1033, %v1158, 0
        %v1169 = vsel %vm1033, %v1162, 0
        %v1172 = vsel %vm1033, %v1164, 0
        %1174 = vmatprep.subr.bf16.mxu0 0
        %1175 = vmatpush1.bf16.xpose.msra.mxu0 %v1169
        %1176 = vmatprep.subr.bf16.mxu0 0
        %1177 = vmatpush1.bf16.xpose.msra.mxu0 %v1172
        %1178 = vmatprep.subr.bf16.mxu0 0
        %1179 = vmatpush1.bf16.xpose.msra.mxu0 0
        %1180 = vmatprep.subr.bf16.mxu0 0
        %1181 = vmatpush1.bf16.xpose.msra.mxu0 0
        %1182 = vmatprep.subr.bf16.mxu0 0
        %1183 = vmatpush1.bf16.xpose.msra.mxu0 0
        %1184 = vmatprep.subr.bf16.mxu0 0
        %1185 = vmatpush1.bf16.xpose.msra.mxu0 0
        %1186 = vmatprep.subr.bf16.mxu0 0
        %1187 = vmatpush1.bf16.xpose.msra.mxu0 0
        %1188 = vmatprep.subr.bf16.mxu0 0
        %1189 = vmatpush1.bf16.xpose.msra.mxu0 0
        %1190 = vmatprep.subr.bf16.mxu0 0
        %1191 = vmatpush1.bf16.xpose.msra.mxu0 0
        %1192 = vmatprep.subr.bf16.mxu0 0
        %1193 = vmatpush1.bf16.xpose.msra.mxu0 0
        %1194 = vmatprep.subr.bf16.mxu0 0
        %1195 = vmatpush1.bf16.xpose.msra.mxu0 0
        %1196 = vmatprep.subr.bf16.mxu0 0
        %1197 = vmatpush1.bf16.xpose.msra.mxu0 0
        %1198 = vmatprep.subr.bf16.mxu0 0
        %1199 = vmatpush1.bf16.xpose.msra.mxu0 0
        %1200 = vmatprep.subr.bf16.mxu0 0
        %1201 = vmatpush1.bf16.xpose.msra.mxu0 0
        %1202 = vmatprep.subr.bf16.mxu0 0
        %1203 = vmatpush1.bf16.xpose.msra.mxu0 0
        %1204 = vmatprep.subr.bf16.mxu0 0
        %1205 = vmatpush1.bf16.xpose.msra.mxu0 0
        %1206 = vmatprep.mubr.bf16.mxu0 0
        %1207 = vmatmul.mubr.bf16.gmra.mrb[0].mxu0 %v1166
        %v1208 = vpop.f32.mrb[0].mxu0
        %v1209 = vadd.f32 0.0, %v1208
        %v1210 = vpop.f32.mrb[0].mxu0
        %v1211 = vpop.f32.mrb[0].mxu0
        %v1212 = vadd.f32 0.0, %v1211
        %v1213 = vpop.f32.mrb[0].mxu0
        %1214 = vdwg.mxu0
        %v1215 = vsel %vm1085, %v1209, -1e+30
        %v1216 = vsel %vm1085, %v1212, -1e+30
        %v1217 = vsel %vm1088, %v1215, -inf
        %1218 = vmax.xlane.f32.xlu0 %v1217
        %v1219 = vpop.xlane.xlu0 %1218
        %v1220 = vsel %vm1088, %v1216, -inf
        %1221 = vmax.xlane.f32.xlu0 %v1220
        %v1222 = vpop.xlane.xlu0 %1221
        %v1223 = vsub.f32 %v1215, %v1219
        %v1224 = vsub.f32 %v1216, %v1222
        %v1225 = vmul.f32 %v1223, 1.442695
        %v1226 = vpow.pop %v1225
        %v1227 = vmul.f32 %v1224, 1.442695
        %v1228 = vpow.pop %v1227
        %v1229 = vsel %vm1088, %v1226, 0.0
        %1230 = vadd.xlane.f32.xlu0 %v1229
        %v1231 = vpop.xlane.xlu0 %1230
        %v1232 = vsel %vm1088, %v1228, 0.0
        %1233 = vadd.xlane.f32.xlu0 %v1232
        %v1234 = vpop.xlane.xlu0 %1233
        %v1235 = vrcp.pop %v1231
        %v1236 = vrcp.pop %v1234
        %v1237 = vpack.c.bf16 %v1228, %v1226
        %1240 = vrot.lane.b32.xlu0 %v1031, 120
        %v1241 = vpop.permute.xlu0 %1240
        %1242 = vrot.lane.b32.xlu0 %v1032, 120
        %v1243 = vpop.permute.xlu0 %1242
        %v1247 = vsel %vm1088, %v1237, 0
        %1249 = vmatprep.subr.bf16.mxu0 0
        %1250 = vmatpush1.bf16.msra.mxu0 %v1241
        %1251 = vmatprep.subr.bf16.mxu0 0
        %1252 = vmatpush1.bf16.msra.mxu0 %v1243
        %1253 = vmatprep.subr.bf16.mxu0 0
        %1254 = vmatpush1.bf16.msra.mxu0 0
        %1255 = vmatprep.subr.bf16.mxu0 0
        %1256 = vmatpush1.bf16.msra.mxu0 0
        %1257 = vmatprep.subr.bf16.mxu0 0
        %1258 = vmatpush1.bf16.msra.mxu0 0
        %1259 = vmatprep.subr.bf16.mxu0 0
        %1260 = vmatpush1.bf16.msra.mxu0 0
        %1261 = vmatprep.subr.bf16.mxu0 0
        %1262 = vmatpush1.bf16.msra.mxu0 0
        %1263 = vmatprep.subr.bf16.mxu0 0
        %1264 = vmatpush1.bf16.msra.mxu0 0
        %1265 = vmatprep.subr.bf16.mxu0 0
        %1266 = vmatpush1.bf16.msra.mxu0 0
        %1267 = vmatprep.subr.bf16.mxu0 0
        %1268 = vmatpush1.bf16.msra.mxu0 0
        %1269 = vmatprep.subr.bf16.mxu0 0
        %1270 = vmatpush1.bf16.msra.mxu0 0
        %1271 = vmatprep.subr.bf16.mxu0 0
        %1272 = vmatpush1.bf16.msra.mxu0 0
        %1273 = vmatprep.subr.bf16.mxu0 0
        %1274 = vmatpush1.bf16.msra.mxu0 0
        %1275 = vmatprep.subr.bf16.mxu0 0
        %1276 = vmatpush1.bf16.msra.mxu0 0
        %1277 = vmatprep.subr.bf16.mxu0 0
        %1278 = vmatpush1.bf16.msra.mxu0 0
        %1279 = vmatprep.subr.bf16.mxu0 0
        %1280 = vmatpush1.bf16.msra.mxu0 0
        %1281 = vmatprep.mubr.bf16.mxu0 0
        %1282 = vmatmul.mubr.bf16.gmra.mrb[0].mxu0 %v1247
        %v1283 = vpop.f32.mrb[0].mxu0
        %v1284 = vadd.f32 0.0, %v1283
        %v1285 = vpop.f32.mrb[0].mxu0
        %v1286 = vpop.f32.mrb[0].mxu0
        %v1287 = vadd.f32 0.0, %v1286
        %v1288 = vpop.f32.mrb[0].mxu0
        %1289 = vdwg.mxu0
        %v1290 = vmul.f32 %v1284, %v1235
        %v1291 = vmul.f32 %v1287, %v1236
        %1292 = vrot.lane.b32.xlu0 %v1028, 112
        %v1293 = vpop.permute.xlu0 %1292
        %1294 = vrot.lane.b32.xlu0 %v1029, 112
        %v1295 = vpop.permute.xlu0 %1294
        %1296 = vrot.lane.b32.xlu0 %v1030, 112
        %v1297 = vpop.permute.xlu0 %1296
        %v1299 = vsel %vm1033, %v1293, 0
        %v1302 = vsel %vm1033, %v1295, 0
        %v1305 = vsel %vm1033, %v1297, 0
        %1307 = vmatprep.subr.bf16.mxu0 0
        %1308 = vmatpush1.bf16.xpose.msra.mxu0 %v1302
        %1309 = vmatprep.subr.bf16.mxu0 0
        %1310 = vmatpush1.bf16.xpose.msra.mxu0 %v1305
        %1311 = vmatprep.subr.bf16.mxu0 0
        %1312 = vmatpush1.bf16.xpose.msra.mxu0 0
        %1313 = vmatprep.subr.bf16.mxu0 0
        %1314 = vmatpush1.bf16.xpose.msra.mxu0 0
        %1315 = vmatprep.subr.bf16.mxu0 0
        %1316 = vmatpush1.bf16.xpose.msra.mxu0 0
        %1317 = vmatprep.subr.bf16.mxu0 0
        %1318 = vmatpush1.bf16.xpose.msra.mxu0 0
        %1319 = vmatprep.subr.bf16.mxu0 0
        %1320 = vmatpush1.bf16.xpose.msra.mxu0 0
        %1321 = vmatprep.subr.bf16.mxu0 0
        %1322 = vmatpush1.bf16.xpose.msra.mxu0 0
        %1323 = vmatprep.subr.bf16.mxu0 0
        %1324 = vmatpush1.bf16.xpose.msra.mxu0 0
        %1325 = vmatprep.subr.bf16.mxu0 0
        %1326 = vmatpush1.bf16.xpose.msra.mxu0 0
        %1327 = vmatprep.subr.bf16.mxu0 0
        %1328 = vmatpush1.bf16.xpose.msra.mxu0 0
        %1329 = vmatprep.subr.bf16.mxu0 0
        %1330 = vmatpush1.bf16.xpose.msra.mxu0 0
        %1331 = vmatprep.subr.bf16.mxu0 0
        %1332 = vmatpush1.bf16.xpose.msra.mxu0 0
        %1333 = vmatprep.subr.bf16.mxu0 0
        %1334 = vmatpush1.bf16.xpose.msra.mxu0 0
        %1335 = vmatprep.subr.bf16.mxu0 0
        %1336 = vmatpush1.bf16.xpose.msra.mxu0 0
        %1337 = vmatprep.subr.bf16.mxu0 0
        %1338 = vmatpush1.bf16.xpose.msra.mxu0 0
        %1339 = vmatprep.mubr.bf16.mxu0 0
        %1340 = vmatmul.mubr.bf16.gmra.mrb[0].mxu0 %v1299
        %v1341 = vpop.f32.mrb[0].mxu0
        %v1342 = vadd.f32 0.0, %v1341
        %v1343 = vpop.f32.mrb[0].mxu0
        %v1344 = vpop.f32.mrb[0].mxu0
        %v1345 = vadd.f32 0.0, %v1344
        %v1346 = vpop.f32.mrb[0].mxu0
        %1347 = vdwg.mxu0
        %v1348 = vsel %vm1085, %v1342, -1e+30
        %v1349 = vsel %vm1085, %v1345, -1e+30
        %v1350 = vsel %vm1088, %v1348, -inf
        %1351 = vmax.xlane.f32.xlu0 %v1350
        %v1352 = vpop.xlane.xlu0 %1351
        %v1353 = vsel %vm1088, %v1349, -inf
        %1354 = vmax.xlane.f32.xlu0 %v1353
        %v1355 = vpop.xlane.xlu0 %1354
        %v1356 = vsub.f32 %v1348, %v1352
        %v1357 = vsub.f32 %v1349, %v1355
        %v1358 = vmul.f32 %v1356, 1.442695
        %v1359 = vpow.pop %v1358
        %v1360 = vmul.f32 %v1357, 1.442695
        %v1361 = vpow.pop %v1360
        %v1362 = vsel %vm1088, %v1359, 0.0
        %1363 = vadd.xlane.f32.xlu0 %v1362
        %v1364 = vpop.xlane.xlu0 %1363
        %v1365 = vsel %vm1088, %v1361, 0.0
        %1366 = vadd.xlane.f32.xlu0 %v1365
        %v1367 = vpop.xlane.xlu0 %1366
        %v1368 = vrcp.pop %v1364
        %v1369 = vrcp.pop %v1367
        %v1370 = vpack.c.bf16 %v1361, %v1359
        %1371 = vrot.lane.b32.xlu0 %v1031, 112
        %v1372 = vpop.permute.xlu0 %1371
        %1373 = vrot.lane.b32.xlu0 %v1032, 112
        %v1374 = vpop.permute.xlu0 %1373
        %v1378 = vsel %vm1088, %v1370, 0
        %1380 = vmatprep.subr.bf16.mxu0 0
        %1381 = vmatpush1.bf16.msra.mxu0 %v1372
        %1382 = vmatprep.subr.bf16.mxu0 0
        %1383 = vmatpush1.bf16.msra.mxu0 %v1374
        %1384 = vmatprep.subr.bf16.mxu0 0
        %1385 = vmatpush1.bf16.msra.mxu0 0
        %1386 = vmatprep.subr.bf16.mxu0 0
        %1387 = vmatpush1.bf16.msra.mxu0 0
        %1388 = vmatprep.subr.bf16.mxu0 0
        %1389 = vmatpush1.bf16.msra.mxu0 0
        %1390 = vmatprep.subr.bf16.mxu0 0
        %1391 = vmatpush1.bf16.msra.mxu0 0
        %1392 = vmatprep.subr.bf16.mxu0 0
        %1393 = vmatpush1.bf16.msra.mxu0 0
        %1394 = vmatprep.subr.bf16.mxu0 0
        %1395 = vmatpush1.bf16.msra.mxu0 0
        %1396 = vmatprep.subr.bf16.mxu0 0
        %1397 = vmatpush1.bf16.msra.mxu0 0
        %1398 = vmatprep.subr.bf16.mxu0 0
        %1399 = vmatpush1.bf16.msra.mxu0 0
        %1400 = vmatprep.subr.bf16.mxu0 0
        %1401 = vmatpush1.bf16.msra.mxu0 0
        %1402 = vmatprep.subr.bf16.mxu0 0
        %1403 = vmatpush1.bf16.msra.mxu0 0
        %1404 = vmatprep.subr.bf16.mxu0 0
        %1405 = vmatpush1.bf16.msra.mxu0 0
        %1406 = vmatprep.subr.bf16.mxu0 0
        %1407 = vmatpush1.bf16.msra.mxu0 0
        %1408 = vmatprep.subr.bf16.mxu0 0
        %1409 = vmatpush1.bf16.msra.mxu0 0
        %1410 = vmatprep.subr.bf16.mxu0 0
        %1411 = vmatpush1.bf16.msra.mxu0 0
        %1412 = vmatprep.mubr.bf16.mxu0 0
        %1413 = vmatmul.mubr.bf16.gmra.mrb[0].mxu0 %v1378
        %v1414 = vpop.f32.mrb[0].mxu0
        %v1415 = vadd.f32 0.0, %v1414
        %v1416 = vpop.f32.mrb[0].mxu0
        %v1417 = vpop.f32.mrb[0].mxu0
        %v1418 = vadd.f32 0.0, %v1417
        %v1419 = vpop.f32.mrb[0].mxu0
        %1420 = vdwg.mxu0
        %v1421 = vmul.f32 %v1415, %v1368
        %v1422 = vmul.f32 %v1418, %v1369
        %1423 = vrot.lane.b32.xlu0 %v1028, 104
        %v1424 = vpop.permute.xlu0 %1423
        %1425 = vrot.lane.b32.xlu0 %v1029, 104
        %v1426 = vpop.permute.xlu0 %1425
        %1427 = vrot.lane.b32.xlu0 %v1030, 104
        %v1428 = vpop.permute.xlu0 %1427
        %v1430 = vsel %vm1033, %v1424, 0
        %v1433 = vsel %vm1033, %v1426, 0
        %v1436 = vsel %vm1033, %v1428, 0
        %1438 = vmatprep.subr.bf16.mxu0 0
        %1439 = vmatpush1.bf16.xpose.msra.mxu0 %v1433
        %1440 = vmatprep.subr.bf16.mxu0 0
        %1441 = vmatpush1.bf16.xpose.msra.mxu0 %v1436
        %1442 = vmatprep.subr.bf16.mxu0 0
        %1443 = vmatpush1.bf16.xpose.msra.mxu0 0
        %1444 = vmatprep.subr.bf16.mxu0 0
        %1445 = vmatpush1.bf16.xpose.msra.mxu0 0
        %1446 = vmatprep.subr.bf16.mxu0 0
        %1447 = vmatpush1.bf16.xpose.msra.mxu0 0
        %1448 = vmatprep.subr.bf16.mxu0 0
        %1449 = vmatpush1.bf16.xpose.msra.mxu0 0
        %1450 = vmatprep.subr.bf16.mxu0 0
        %1451 = vmatpush1.bf16.xpose.msra.mxu0 0
        %1452 = vmatprep.subr.bf16.mxu0 0
        %1453 = vmatpush1.bf16.xpose.msra.mxu0 0
        %1454 = vmatprep.subr.bf16.mxu0 0
        %1455 = vmatpush1.bf16.xpose.msra.mxu0 0
        %1456 = vmatprep.subr.bf16.mxu0 0
        %1457 = vmatpush1.bf16.xpose.msra.mxu0 0
        %1458 = vmatprep.subr.bf16.mxu0 0
        %1459 = vmatpush1.bf16.xpose.msra.mxu0 0
        %1460 = vmatprep.subr.bf16.mxu0 0
        %1461 = vmatpush1.bf16.xpose.msra.mxu0 0
        %1462 = vmatprep.subr.bf16.mxu0 0
        %1463 = vmatpush1.bf16.xpose.msra.mxu0 0
        %1464 = vmatprep.subr.bf16.mxu0 0
        %1465 = vmatpush1.bf16.xpose.msra.mxu0 0
        %1466 = vmatprep.subr.bf16.mxu0 0
        %1467 = vmatpush1.bf16.xpose.msra.mxu0 0
        %1468 = vmatprep.subr.bf16.mxu0 0
        %1469 = vmatpush1.bf16.xpose.msra.mxu0 0
        %1470 = vmatprep.mubr.bf16.mxu0 0
        %1471 = vmatmul.mubr.bf16.gmra.mrb[0].mxu0 %v1430
        %v1472 = vpop.f32.mrb[0].mxu0
        %v1473 = vadd.f32 0.0, %v1472
        %v1474 = vpop.f32.mrb[0].mxu0
        %v1475 = vpop.f32.mrb[0].mxu0
        %v1476 = vadd.f32 0.0, %v1475
        %v1477 = vpop.f32.mrb[0].mxu0
        %1478 = vdwg.mxu0
        %v1479 = vsel %vm1085, %v1473, -1e+30
        %v1480 = vsel %vm1085, %v1476, -1e+30
        %v1481 = vsel %vm1088, %v1479, -inf
        %1482 = vmax.xlane.f32.xlu0 %v1481
        %v1483 = vpop.xlane.xlu0 %1482
        %v1484 = vsel %vm1088, %v1480, -inf
        %1485 = vmax.xlane.f32.xlu0 %v1484
        %v1486 = vpop.xlane.xlu0 %1485
        %v1487 = vsub.f32 %v1479, %v1483
        %v1488 = vsub.f32 %v1480, %v1486
        %v1489 = vmul.f32 %v1487, 1.442695
        %v1490 = vpow.pop %v1489
        %v1491 = vmul.f32 %v1488, 1.442695
        %v1492 = vpow.pop %v1491
        %v1493 = vsel %vm1088, %v1490, 0.0
        %1494 = vadd.xlane.f32.xlu0 %v1493
        %v1495 = vpop.xlane.xlu0 %1494
        %v1496 = vsel %vm1088, %v1492, 0.0
        %1497 = vadd.xlane.f32.xlu0 %v1496
        %v1498 = vpop.xlane.xlu0 %1497
        %v1499 = vrcp.pop %v1495
        %v1500 = vrcp.pop %v1498
        %v1501 = vpack.c.bf16 %v1492, %v1490
        %1502 = vrot.lane.b32.xlu0 %v1031, 104
        %v1503 = vpop.permute.xlu0 %1502
        %1504 = vrot.lane.b32.xlu0 %v1032, 104
        %v1505 = vpop.permute.xlu0 %1504
        %v1509 = vsel %vm1088, %v1501, 0
        %1511 = vmatprep.subr.bf16.mxu0 0
        %1512 = vmatpush1.bf16.msra.mxu0 %v1503
        %1513 = vmatprep.subr.bf16.mxu0 0
        %1514 = vmatpush1.bf16.msra.mxu0 %v1505
        %1515 = vmatprep.subr.bf16.mxu0 0
        %1516 = vmatpush1.bf16.msra.mxu0 0
        %1517 = vmatprep.subr.bf16.mxu0 0
        %1518 = vmatpush1.bf16.msra.mxu0 0
        %1519 = vmatprep.subr.bf16.mxu0 0
        %1520 = vmatpush1.bf16.msra.mxu0 0
        %1521 = vmatprep.subr.bf16.mxu0 0
        %1522 = vmatpush1.bf16.msra.mxu0 0
        %1523 = vmatprep.subr.bf16.mxu0 0
        %1524 = vmatpush1.bf16.msra.mxu0 0
        %1525 = vmatprep.subr.bf16.mxu0 0
        %1526 = vmatpush1.bf16.msra.mxu0 0
        %1527 = vmatprep.subr.bf16.mxu0 0
        %1528 = vmatpush1.bf16.msra.mxu0 0
        %1529 = vmatprep.subr.bf16.mxu0 0
        %1530 = vmatpush1.bf16.msra.mxu0 0
        %1531 = vmatprep.subr.bf16.mxu0 0
        %1532 = vmatpush1.bf16.msra.mxu0 0
        %1533 = vmatprep.subr.bf16.mxu0 0
        %1534 = vmatpush1.bf16.msra.mxu0 0
        %1535 = vmatprep.subr.bf16.mxu0 0
        %1536 = vmatpush1.bf16.msra.mxu0 0
        %1537 = vmatprep.subr.bf16.mxu0 0
        %1538 = vmatpush1.bf16.msra.mxu0 0
        %1539 = vmatprep.subr.bf16.mxu0 0
        %1540 = vmatpush1.bf16.msra.mxu0 0
        %1541 = vmatprep.subr.bf16.mxu0 0
        %1542 = vmatpush1.bf16.msra.mxu0 0
        %1543 = vmatprep.mubr.bf16.mxu0 0
        %1544 = vmatmul.mubr.bf16.gmra.mrb[0].mxu0 %v1509
        %v1545 = vpop.f32.mrb[0].mxu0
        %v1546 = vadd.f32 0.0, %v1545
        %v1547 = vpop.f32.mrb[0].mxu0
        %v1548 = vpop.f32.mrb[0].mxu0
        %v1549 = vadd.f32 0.0, %v1548
        %v1550 = vpop.f32.mrb[0].mxu0
        %1551 = vdwg.mxu0
        %v1552 = vmul.f32 %v1546, %v1499
        %v1553 = vmul.f32 %v1549, %v1500
        %1556 = vrot.lane.b32.xlu0 %v1290, 8
        %v1557 = vpop.permute.xlu0 %1556
        %1558 = vrot.lane.b32.xlu0 %v1291, 8
        %v1559 = vpop.permute.xlu0 %1558
        %1564 = vrot.lane.b32.xlu0 %v1421, 16
        %v1565 = vpop.permute.xlu0 %1564
        %1566 = vrot.lane.b32.xlu0 %v1422, 16
        %v1567 = vpop.permute.xlu0 %1566
        %1572 = vrot.lane.b32.xlu0 %v1552, 24
        %v1573 = vpop.permute.xlu0 %1572
        %1574 = vrot.lane.b32.xlu0 %v1553, 24
        %v1575 = vpop.permute.xlu0 %1574
        %v1578 = vsel %vm1033, %v1154, %v1557
        %v1579 = vsel %vm1033, %v1155, %v1559
        %vm1580 = vcmask 130048
        %v1581 = vsel %vm1580, %v1578, %v1565
        %v1582 = vsel %vm1580, %v1579, %v1567
        %vm1583 = vcmask 195584
        %v1584 = vsel %vm1583, %v1581, %v1573
        %v1585 = vsel %vm1583, %v1582, %v1575
        %v1586 = vpack.c.bf16 %v1585, %v1584
        %v1587 = vld [vmem:[#allocation11] sm:$0xf]
        %v1588 = vld [vmem:[#allocation11 + $0x4] sm:$0xf]
        %v1589 = vld [vmem:[#allocation11 + $0x8] sm:$0xf]
        %v1590 = vld [vmem:[#allocation11 + $0xc] sm:$0xf]
        %v1591 = vlaneseq
        %v1592 = vshrl.u32 %v1591, 7
        %v1593 = vsub.s32 0, %v1592
        %v1594 = vrot.slane %v809, %v1593
        %v1599 = vunpack.c.l.b16 %v1587
        %v1600 = vunpack.c.l.b16 %v1588
        %v1601 = vunpack.c.l.b16 %v1589
        %v1602 = vunpack.c.l.b16 %v1590
        %v1603 = vpack.c.b16 %v1600, %v1599
        %v1604 = vpack.c.b16 %v1602, %v1601
        %v1608 = vsel %vm1088, %v1586, 0
        %1610 = vmatprep.subr.bf16.mxu0 0
        %1611 = vmatpush1.bf16.msra.mxu0 %v1603
        %1612 = vmatprep.subr.bf16.mxu0 0
        %1613 = vmatpush1.bf16.msra.mxu0 %v1604
        %1614 = vmatprep.subr.bf16.mxu0 0
        %1615 = vmatpush1.bf16.msra.mxu0 0
        %1616 = vmatprep.subr.bf16.mxu0 0
        %1617 = vmatpush1.bf16.msra.mxu0 0
        %1618 = vmatprep.subr.bf16.mxu0 0
        %1619 = vmatpush1.bf16.msra.mxu0 0
        %1620 = vmatprep.subr.bf16.mxu0 0
        %1621 = vmatpush1.bf16.msra.mxu0 0
        %1622 = vmatprep.subr.bf16.mxu0 0
        %1623 = vmatpush1.bf16.msra.mxu0 0
        %1624 = vmatprep.subr.bf16.mxu0 0
        %1625 = vmatpush1.bf16.msra.mxu0 0
        %1626 = vmatprep.subr.bf16.mxu0 0
        %1627 = vmatpush1.bf16.msra.mxu0 0
        %1628 = vmatprep.subr.bf16.mxu0 0
        %1629 = vmatpush1.bf16.msra.mxu0 0
        %1630 = vmatprep.subr.bf16.mxu0 0
        %1631 = vmatpush1.bf16.msra.mxu0 0
        %1632 = vmatprep.subr.bf16.mxu0 0
        %1633 = vmatpush1.bf16.msra.mxu0 0
        %1634 = vmatprep.subr.bf16.mxu0 0
        %1635 = vmatpush1.bf16.msra.mxu0 0
        %1636 = vmatprep.subr.bf16.mxu0 0
        %1637 = vmatpush1.bf16.msra.mxu0 0
        %1638 = vmatprep.subr.bf16.mxu0 0
        %1639 = vmatpush1.bf16.msra.mxu0 0
        %1640 = vmatprep.subr.bf16.mxu0 0
        %1641 = vmatpush1.bf16.msra.mxu0 0
        %1642 = vmatprep.mubr.bf16.mxu0 0
        %1643 = vmatmul.mubr.bf16.gmra.mrb[0].mxu0 %v1608
        %v1644 = vpop.f32.mrb[0].mxu0
        %v1645 = vadd.f32 %v1594, %v1644
        %v1646 = vpop.f32.mrb[0].mxu0
        %v1647 = vpop.f32.mrb[0].mxu0
        %v1648 = vadd.f32 %v1594, %v1647
        %v1649 = vpop.f32.mrb[0].mxu0
        %1650 = vdwg.mxu0
        %v1651 = vadd.f32 %v1645, %v1023
        %v1652 = vadd.f32 %v1648, %v1024
        %v1653 = vsel %vm1088, %v1651, 0.0
        %1654 = vadd.xlane.f32.xlu0 %v1653
        %v1655 = vpop.xlane.xlu0 %1654
        %v1656 = vsel %vm1088, %v1652, 0.0
        %1657 = vadd.xlane.f32.xlu0 %v1656
        %v1658 = vpop.xlane.xlu0 %1657
        %v1659 = vrcp.pop 32.0
        %v1660 = vmul.f32 %v1655, %v1659
        %v1661 = vmul.f32 %v1658, %v1659
        %v1662 = vsub.f32 %v1651, %v1660
        %v1663 = vsub.f32 %v1652, %v1661
        %v1664 = vmul.f32 %v1662, %v1662
        %v1665 = vmul.f32 %v1663, %v1663
        %v1666 = vsel %vm1088, %v1664, 0.0
        %1667 = vadd.xlane.f32.xlu0 %v1666
        %v1668 = vpop.xlane.xlu0 %1667
        %v1669 = vsel %vm1088, %v1665, 0.0
        %1670 = vadd.xlane.f32.xlu0 %v1669
        %v1671 = vpop.xlane.xlu0 %1670
        %v1672 = vmul.f32 %v1668, %v1659
        %v1673 = vmul.f32 %v1671, %v1659
        %v1674 = vadd.f32 %v1672, 1e-05
        %v1675 = vadd.f32 %v1673, 1e-05
        %v1676 = vrsqrt.pop %v1674
        %v1677 = vrsqrt.pop %v1675
        %v1678 = vmul.f32 %v1662, %v1676
        %v1679 = vmul.f32 %v1663, %v1677
        %v1680 = vlaneseq
        %v1681 = vshrl.u32 %v1680, 7
        %v1682 = vsub.s32 1, %v1681
        %v1683 = vrot.slane %v809, %v1682
        %v1684 = vmul.f32 %v1678, %v1683
        %v1685 = vmul.f32 %v1679, %v1683
        %v1686 = vlaneseq
        %v1687 = vshrl.u32 %v1686, 7
        %v1688 = vsub.s32 2, %v1687
        %v1689 = vrot.slane %v809, %v1688
        %v1690 = vadd.f32 %v1684, %v1689
        %v1691 = vadd.f32 %v1685, %v1689
        %v1692 = vpack.c.bf16 %v1691, %v1690
        %v1693 = vld [vmem:[#allocation13] sm:$0xf]
        %v1694 = vld [vmem:[#allocation13 + $0x4] sm:$0xf]
        %v1695 = vld [vmem:[#allocation13 + $0x8] sm:$0xf]
        %v1696 = vld [vmem:[#allocation13 + $0xc] sm:$0xf]
        %v1697 = vld [vmem:[%s8] sm:$0x1]
        %v1699 = vlaneseq
        %v1700 = vshrl.u32 %v1699, 7
        %v1701 = vsub.s32 0, %v1700
        %v1702 = vrot.slane %v1697, %v1701
        %v1708 = vunpack.c.l.b16 %v1693
        %v1709 = vunpack.c.l.b16 %v1694
        %v1710 = vunpack.c.l.b16 %v1695
        %v1711 = vunpack.c.l.b16 %v1696
        %v1712 = vpack.c.b16 %v1709, %v1708
        %v1713 = vpack.c.b16 %v1711, %v1710
        %v1717 = vsel %vm1088, %v1692, 0
        %1719 = vmatprep.subr.bf16.mxu0 0
        %1720 = vmatpush1.bf16.msra.mxu0 %v1712
        %1721 = vmatprep.subr.bf16.mxu0 0
        %1722 = vmatpush1.bf16.msra.mxu0 %v1713
        %1723 = vmatprep.subr.bf16.mxu0 0
        %1724 = vmatpush1.bf16.msra.mxu0 0
        %1725 = vmatprep.subr.bf16.mxu0 0
        %1726 = vmatpush1.bf16.msra.mxu0 0
        %1727 = vmatprep.subr.bf16.mxu0 0
        %1728 = vmatpush1.bf16.msra.mxu0 0
        %1729 = vmatprep.subr.bf16.mxu0 0
        %1730 = vmatpush1.bf16.msra.mxu0 0
        %1731 = vmatprep.subr.bf16.mxu0 0
        %1732 = vmatpush1.bf16.msra.mxu0 0
        %1733 = vmatprep.subr.bf16.mxu0 0
        %1734 = vmatpush1.bf16.msra.mxu0 0
        %1735 = vmatprep.subr.bf16.mxu0 0
        %1736 = vmatpush1.bf16.msra.mxu0 0
        %1737 = vmatprep.subr.bf16.mxu0 0
        %1738 = vmatpush1.bf16.msra.mxu0 0
        %1739 = vmatprep.subr.bf16.mxu0 0
        %1740 = vmatpush1.bf16.msra.mxu0 0
        %1741 = vmatprep.subr.bf16.mxu0 0
        %1742 = vmatpush1.bf16.msra.mxu0 0
        %1743 = vmatprep.subr.bf16.mxu0 0
        %1744 = vmatpush1.bf16.msra.mxu0 0
        %1745 = vmatprep.subr.bf16.mxu0 0
        %1746 = vmatpush1.bf16.msra.mxu0 0
        %1747 = vmatprep.subr.bf16.mxu0 0
        %1748 = vmatpush1.bf16.msra.mxu0 0
        %1749 = vmatprep.subr.bf16.mxu0 0
        %1750 = vmatpush1.bf16.msra.mxu0 0
        %1751 = vmatprep.mubr.bf16.mxu0 0
        %1752 = vmatmul.mubr.bf16.gmra.mrb[0].mxu0 %v1717
        %v1753 = vpop.f32.mrb[0].mxu0
        %v1754 = vadd.f32 %v1702, %v1753
        %v1755 = vpop.f32.mrb[0].mxu0
        %v1756 = vpop.f32.mrb[0].mxu0
        %v1757 = vadd.f32 %v1702, %v1756
        %v1758 = vpop.f32.mrb[0].mxu0
        %1759 = vdwg.mxu0
        %v1760 = vmax.f32 %v1754, 0.0
        %v1761 = vmax.f32 %v1757, 0.0
        %v1762 = vpack.c.bf16 %v1761, %v1760
        %v1763 = vld [vmem:[%s9] sm:$0xf]
        %v1764 = vld [vmem:[%s9 + $0x4] sm:$0xf]
        %v1765 = vld [vmem:[%s9 + $0x8] sm:$0xf]
        %v1766 = vld [vmem:[%s9 + $0xc] sm:$0xf]
        %v1767 = vld [vmem:[%s9 + $0x10] sm:$0xf]
        %v1768 = vld [vmem:[%s9 + $0x14] sm:$0xf]
        %v1769 = vld [vmem:[%s9 + $0x18] sm:$0xf]
        %v1770 = vld [vmem:[%s9 + $0x1c] sm:$0xf]
        %v1771 = vlaneseq
        %v1772 = vshrl.u32 %v1771, 7
        %v1773 = vsub.s32 3, %v1772
        %v1774 = vrot.slane %v809, %v1773
        %v1783 = vunpack.c.l.b16 %v1763
        %v1784 = vunpack.c.l.b16 %v1764
        %v1785 = vunpack.c.l.b16 %v1765
        %v1786 = vunpack.c.l.b16 %v1766
        %v1787 = vunpack.c.l.b16 %v1767
        %v1788 = vunpack.c.l.b16 %v1768
        %v1789 = vunpack.c.l.b16 %v1769
        %v1790 = vunpack.c.l.b16 %v1770
        %v1791 = vpack.c.b16 %v1784, %v1783
        %v1792 = vpack.c.b16 %v1786, %v1785
        %v1793 = vpack.c.b16 %v1788, %v1787
        %v1794 = vpack.c.b16 %v1790, %v1789
        %vm1799 = vcmask 523264
        %v1801 = vsel %vm1799, %v1762, 0
        %1803 = vmatprep.subr.bf16.mxu0 0
        %1804 = vmatpush1.bf16.msra.mxu0 %v1791
        %1805 = vmatprep.subr.bf16.mxu0 0
        %1806 = vmatpush1.bf16.msra.mxu0 %v1792
        %1807 = vmatprep.subr.bf16.mxu0 0
        %1808 = vmatpush1.bf16.msra.mxu0 %v1793
        %1809 = vmatprep.subr.bf16.mxu0 0
        %1810 = vmatpush1.bf16.msra.mxu0 %v1794
        %1811 = vmatprep.subr.bf16.mxu0 0
        %1812 = vmatpush1.bf16.msra.mxu0 0
        %1813 = vmatprep.subr.bf16.mxu0 0
        %1814 = vmatpush1.bf16.msra.mxu0 0
        %1815 = vmatprep.subr.bf16.mxu0 0
        %1816 = vmatpush1.bf16.msra.mxu0 0
        %1817 = vmatprep.subr.bf16.mxu0 0
        %1818 = vmatpush1.bf16.msra.mxu0 0
        %1819 = vmatprep.subr.bf16.mxu0 0
        %1820 = vmatpush1.bf16.msra.mxu0 0
        %1821 = vmatprep.subr.bf16.mxu0 0
        %1822 = vmatpush1.bf16.msra.mxu0 0
        %1823 = vmatprep.subr.bf16.mxu0 0
        %1824 = vmatpush1.bf16.msra.mxu0 0
        %1825 = vmatprep.subr.bf16.mxu0 0
        %1826 = vmatpush1.bf16.msra.mxu0 0
        %1827 = vmatprep.subr.bf16.mxu0 0
        %1828 = vmatpush1.bf16.msra.mxu0 0
        %1829 = vmatprep.subr.bf16.mxu0 0
        %1830 = vmatpush1.bf16.msra.mxu0 0
        %1831 = vmatprep.subr.bf16.mxu0 0
        %1832 = vmatpush1.bf16.msra.mxu0 0
        %1833 = vmatprep.subr.bf16.mxu0 0
        %1834 = vmatpush1.bf16.msra.mxu0 0
        %1835 = vmatprep.mubr.bf16.mxu0 0
        %1836 = vmatmul.mubr.bf16.gmra.mrb[0].mxu0 %v1801
        %v1837 = vpop.f32.mrb[0].mxu0
        %v1838 = vadd.f32 %v1774, %v1837
        %v1839 = vpop.f32.mrb[0].mxu0
        %v1840 = vpop.f32.mrb[0].mxu0
        %v1841 = vadd.f32 %v1774, %v1840
        %v1842 = vpop.f32.mrb[0].mxu0
        %1843 = vdwg.mxu0
        %v1844 = vadd.f32 %v1651, %v1838
        %v1845 = vadd.f32 %v1652, %v1841
        %1846 = vst.msk [vmem:[%s398] sm:$0xff] %vm1088, %v1844
        %1847 = vst.msk [vmem:[%s398 + $0x8] sm:$0xff] %vm1088, %v1845
        %s1848 = sand.u32 %s248, 1
        %s1849 = scalar_lea.sflag [#allocation10], %s1848
        %s1850 = sand.u32 %s248, 1
        %s1851 = smul.addr %s1850, 16
        %s1852 = scalar_lea.vmem [#allocation14], %s1851
        // Predicated region
        $region73: #{tpu_custom_call.1} parent=55 // pred_check
          %p1853 = pneg %p258
        $region74: #{tpu_custom_call.1} parent=55 // pred_check_branch
          %1855 = sbr.rel (%p1853) target = $region76
        $region75: #{tpu_custom_call.1} parent=55 // pred_region
          %s1856 = smul.u32 2, %s37
          %s1858 = ssub.s32 256, 256
          %1859 = vsyncadd %s1849, %s1858
          %s1860 = smul.addr %s36, 4
          %s1861 = sadd.s32 %s1856, %s1860
          %s1862 = smul.addr %s1861, 128
          %s1863 = scalar_lea.hbm %s10, %s1862
          %s1864 = sshll.u32 %s1852, 4
          %s1865 = int_to_ptr.vmem [resolvable:$true] %s1864
          %1870 = dma.vmem_to_hbm [thread:$0]  %s1865, 256, %s1863, %s1849, 128, 128, 8
        $region76: #{tpu_custom_call.1} parent=55 // pred_fallthru
          _
      $region56: #{tpu_custom_call.1} parent=5 // pred_fallthru
        _
      %p1871 = scmp.le.s32.totalorder 2, %s27
      // Predicated region
      $region77: #{tpu_custom_call.1} parent=5 // pred_check
        %p1872 = pneg %p1871
      $region78: #{tpu_custom_call.1} parent=5 // pred_check_branch
        %1874 = sbr.rel (%p1872) target = $region80
      $region79: #{tpu_custom_call.1} parent=5 // pred_region
        %s1875 = ssub.s32 %s27, 2
        // Predicated region
        $region81: #{tpu_custom_call.1} parent=79 // pred_check
          %p1876 = pneg %p264
        $region82: #{tpu_custom_call.1} parent=79 // pred_check_branch
          %1878 = sbr.rel (%p1876) target = $region84
        $region83: #{tpu_custom_call.1} parent=79 // pred_region
          %s1879 = sand.u32 %s249, 1
          %s1880 = scalar_lea.sflag [#allocation10], %s1879
          %s1881 = sand.u32 %s249, 1
          %s1882 = smul.addr %s1881, 16
          %s1883 = scalar_lea.vmem [#allocation14], %s1882
          %1884 = dma.done %s1880, 256
        $region84: #{tpu_custom_call.1} parent=79 // pred_fallthru
          _
      $region80: #{tpu_custom_call.1} parent=5 // pred_fallthru
        _
    $region6: #{tpu_custom_call.1} parent=1 // loop_footer
      %s31 = sadd.s32 1, %s27
    $region7: #{tpu_custom_call.1} parent=1 // loop_footer_branch
      %26 = sbr.rel target = $region3
    $region8: #{tpu_custom_call.1} parent=1 // loop_exit
      _
    %1885 = vsyncpa [#allocation9], 1
    %s1886 = scalar_lea.sflag [#allocation9], 1
    %1887 = vsyncpa %s1886, 1
    %1888 = vsyncpa [#allocation12], 1
    %1889 = vsyncpa [#allocation10], 1
    %s1890 = scalar_lea.sflag [#allocation10], 1
    %1891 = vsyncpa %s1890, 1

</llo_original>
